<compile_context>
chip_gen: v6e
topology: v6e:2x2x1
jax: 0.10.0
libtpu: 0.0.40
codegen_flags: <defaults>
</compile_context>

<pallas_src>
import functools

import jax
import jax.numpy as jnp
from jax.experimental import pallas as pl
from jax.experimental.pallas import tpu as pltpu

# ---------------- configuration ----------------
CHAR_VOCAB  = 64    # V: char vocabulary size
EMB_DIM     = 32    # E: char embedding dim
NUM_FILTERS = 128   # F: encoder output dim per token
KERNEL_SIZE = 3     # K: conv kernel width


def _round_up(x, m):
    return ((x + m - 1) // m) * m


def _cdiv(a, b):
    return -(-a // b)


# ---------------- Pallas kernel ----------------
def _char_cnn_kernel(ids_ref, w_hi_ref, w_lo_ref, b_ref, out_ref, oh_ref,
                     *, kernel_size, vocab_pad):
    # ids_ref : (TM, L)        int32 char ids for a tile of tokens
    # w_hi_ref: (K*Vp, F)      bf16 fused (embedding @ conv) weights, high half
    # w_lo_ref: (K*Vp, F)      bf16 residual (w - w_hi), low half
    # b_ref   : (1, F)         f32 conv bias
    # out_ref : (TM, F)        f32 max-over-time pooled encoder output
    # oh_ref  : (L_out*TM, K*Vp) bf16 VMEM scratch: stacked one-hot LHS
    TM, L = ids_ref.shape
    KVp, F = w_hi_ref.shape
    K = kernel_size
    Vp = vocab_pad
    L_out = L - K + 1                       # 'valid' conv (Conv1d padding=0)

    ids = ids_ref[...]                      # (TM, L) int32

    # One-hot of every char position, computed ONCE and reused across the K taps
    # (no per-position where-chains).  Exact 0/1 in bf16.
    sym = jax.lax.broadcasted_iota(jnp.int32, (TM, Vp), 1)          # lane v in [0, Vp)
    onehot = [(ids[:, s:s + 1] == sym).astype(jnp.bfloat16) for s in range(L)]

    # Stacked LHS: row block t (TM rows) = output position t, lane block j (Vp lanes)
    # = conv tap j, content = one-hot of char t+j.  All stores are (8,128)-aligned
    # (TM is a multiple of 8, Vp a multiple of 128).
    for t in range(L_out):
        for j in range(K):
            oh_ref[t * TM:(t + 1) * TM, j * Vp:(j + 1) * Vp] = onehot[t + j]

    # One big MXU contraction per weight half, accumulated in f32:
    #   conv[t*TM+n, f] = sum_j W_fused[j, ids[n, t+j], f]
    stacked = oh_ref[...]                                            # (L_out*TM, K*Vp) bf16
    acc = (jnp.dot(stacked, w_hi_ref[...], preferred_element_type=jnp.float32)
           + jnp.dot(stacked, w_lo_ref[...], preferred_element_type=jnp.float32))

    # Max over time (row blocks are sublane-tile aligned slices of acc).
    pooled = acc[0:TM, :]
    for t in range(1, L_out):
        pooled = jnp.maximum(pooled, acc[t * TM:(t + 1) * TM, :])

    # Bias + ReLU hoisted out of the position loop:
    #   max_t relu(conv_t + b) == relu(max_t(conv_t) + b)   (ReLU monotone).
    out_ref[...] = jnp.maximum(pooled + b_ref[...], 0.0).astype(out_ref.dtype)


# ---------------- wrapper ----------------
def char_token_encoder(char_ids, emb_table, conv_w, conv_b, *, tm=512):
    """char_ids: (B, S, L) int -> (B, S, NUM_FILTERS) float32."""
    B, S, L = char_ids.shape
    V, E = emb_table.shape
    K, E2, F = conv_w.shape
    assert E == E2
    N = B * S
    L_out = L - K + 1

    # Fuse the embedding lookup into the conv weights (done once, true f32):
    #   W_fused[j, v, f] = sum_e emb[v, e] * conv_w[j, e, f]
    w_fused = jnp.einsum("ve,kef->kvf",
                         emb_table.astype(jnp.float32),
                         conv_w.astype(jnp.float32),
                         precision="highest")                        # (K, V, F)

    # Pad the vocab dim to a multiple of 128 so each tap's one-hot block is a full,
    # lane-aligned vreg width (padded weight rows are zero -> no effect on result).
    Vp = _round_up(V, 128)
    w_pad = jnp.pad(w_fused, ((0, 0), (0, Vp - V), (0, 0)))          # (K, Vp, F)
    w_stack = w_pad.reshape(K * Vp, F).astype(jnp.float32)           # row = j*Vp + v

    # Exact bf16 split: w ~= w_hi + w_lo, both bf16; two bf16 matmuls summed in f32
    # recover ~full f32 accuracy at native MXU rate.
    w_hi = w_stack.astype(jnp.bfloat16)
    w_lo = (w_stack - w_hi.astype(jnp.float32)).astype(jnp.bfloat16)
    bias = conv_b.reshape(1, F).astype(jnp.float32)

    # glue (matches inputs.view(-1, char_seq)); dropout = 0.0 -> identity.
    flat_ids = char_ids.reshape(N, L).astype(jnp.int32)

    # Balanced tiling: avoid a nearly-empty padded last tile, and keep the grid length
    # even (when > 1) so v7x's two TensorCores both get work via the "parallel" axis.
    num_tiles = _cdiv(N, tm)
    if num_tiles > 1 and num_tiles % 2 == 1:
        num_tiles += 1
    tm_eff = _round_up(_cdiv(N, num_tiles), 8)
    n_pad = tm_eff * num_tiles
    if n_pad != N:
        flat_ids = jnp.pad(flat_ids, ((0, n_pad - N), (0, 0)))       # id 0 is valid

    kernel = functools.partial(_char_cnn_kernel, kernel_size=K, vocab_pad=Vp)
    out_flat = pl.pallas_call(
        kernel,
        out_shape=jax.ShapeDtypeStruct((n_pad, F), jnp.float32),
        grid_spec=pltpu.PrefetchScalarGridSpec(
            num_scalar_prefetch=0,
            grid=(num_tiles,),
            in_specs=[
                pl.BlockSpec((tm_eff, L), lambda i: (i, 0)),         # int32 ids (64 B/token)
                pl.BlockSpec((K * Vp, F), lambda i: (0, 0)),         # bf16 weights hi (resident)
                pl.BlockSpec((K * Vp, F), lambda i: (0, 0)),         # bf16 weights lo (resident)
                pl.BlockSpec((1, F), lambda i: (0, 0)),              # bias (resident)
            ],
            out_specs=pl.BlockSpec((tm_eff, F), lambda i: (i, 0)),   # lane-dense (tm, 128)
            scratch_shapes=[
                pltpu.VMEM((L_out * tm_eff, K * Vp), jnp.bfloat16),  # stacked one-hot LHS
            ],
        ),
        compiler_params=pltpu.CompilerParams(
            dimension_semantics=("parallel",),
            vmem_limit_bytes=32 * 1024 * 1024),
    )(flat_ids, w_hi, w_lo, bias)

    # Padded rows produce real outputs; keep the [:N] slice. Matches
    # .view(batch_size, sent_size, -1).
    return out_flat[:N].reshape(B, S, F)


# ---------------- pure-JAX reference ----------------
def reference(char_ids, emb_table, conv_w, conv_b):
    B, S, L = char_ids.shape
    emb = emb_table[char_ids.reshape(-1, L)]      # (N, L, E) gather
    K = conv_w.shape[0]
    L_out = L - K + 1
    conv = sum(jnp.einsum("nle,ef->nlf", emb[:, j:j + L_out, :], conv_w[j],
                          precision="highest")
               for j in range(K)) + conv_b[0]
    pooled = jnp.max(jnp.maximum(conv, 0.0), axis=1)
    return pooled.reshape(B, S, -1)


if __name__ == "__main__":
    key = jax.random.PRNGKey(0)
    k_ids, k_emb, k_w, k_b = jax.random.split(key, 4)

    B, S, L = 2, 8, 16  # batch, sentence length, char-sequence length

    char_ids  = jax.random.randint(k_ids, (B, S, L), 0, CHAR_VOCAB, dtype=jnp.int32)
    emb_table = jax.random.normal(k_emb, (CHAR_VOCAB, EMB_DIM), jnp.float32) * 0.1
    conv_w    = jax.random.normal(k_w, (KERNEL_SIZE, EMB_DIM, NUM_FILTERS), jnp.float32) * 0.1
    conv_b    = jax.random.normal(k_b, (1, NUM_FILTERS), jnp.float32) * 0.1

    out = char_token_encoder(char_ids, emb_table, conv_w, conv_b)
    out = jax.block_until_ready(out)

    ref = reference(char_ids, emb_table, conv_w, conv_b)
    assert out.shape == (B, S, NUM_FILTERS), out.shape
    assert jnp.allclose(out, ref, atol=1e-4, rtol=1e-4), "mismatch vs reference"

    # TODO(synk): dropout with p > 0 (in-kernel PRNG mask) not implemented; the
    # module is instantiated with dropout=0.0 which is the identity.
    print("KERNEL_OK")
</pallas_src>

<mosaic_0001>
module attributes {stable_mosaic.version = 11 : i64} {
  func.func @_char_cnn_kernel(%arg0: i32, %arg1: memref<16x16xi32, #tpu.memory_space<vmem>>, %arg2: memref<384x128xbf16, #tpu.memory_space<vmem>>, %arg3: memref<384x128xbf16, #tpu.memory_space<vmem>>, %arg4: memref<1x128xf32, #tpu.memory_space<vmem>>, %arg5: memref<16x128xf32, #tpu.memory_space<vmem>>, %arg6: memref<224x384xbf16, #tpu.memory_space<vmem>>) attributes {dimension_semantics = [#tpu.dimension_semantics<parallel>], iteration_bounds = array<i64: 1>, scalar_prefetch = 0 : i64, scratch_operands = 1 : i64, tpu.core_type = #tpu.core_type<tc>, window_params = [{transform_indices = @transform_0, window_bounds = array<i64: 16, 16>}, {pipeline_mode = #tpu.pipeline_mode<synchronous>, transform_indices = @transform_1, window_bounds = array<i64: 384, 128>}, {pipeline_mode = #tpu.pipeline_mode<synchronous>, transform_indices = @transform_2, window_bounds = array<i64: 384, 128>}, {pipeline_mode = #tpu.pipeline_mode<synchronous>, transform_indices = @transform_3, window_bounds = array<i64: 1, 128>}, {transform_indices = @transform_4, window_bounds = array<i64: 16, 128>}]} {
    %c0 = arith.constant 0 : index
    %c0_0 = arith.constant 0 : index
    %0 = vector.load %arg1[%c0, %c0_0] : memref<16x16xi32, #tpu.memory_space<vmem>>, vector<16x16xi32>
    %1 = tpu.iota {dimensions = array<i32: 1>} : vector<16x128xi32>
    %2 = vector.extract_strided_slice %0 {offsets = [0, 0], sizes = [16, 1], strides = [1, 1]} : vector<16x16xi32> to vector<16x1xi32>
    %3 = vector.broadcast %2 : vector<16x1xi32> to vector<16x128xi32>
    %4 = arith.cmpi eq, %3, %1 : vector<16x128xi32>
    %5 = arith.extui %4 : vector<16x128xi1> to vector<16x128xi32>
    %6 = arith.sitofp %5 : vector<16x128xi32> to vector<16x128xf32>
    %7 = arith.truncf %6 : vector<16x128xf32> to vector<16x128xbf16>
    %8 = vector.extract_strided_slice %0 {offsets = [0, 1], sizes = [16, 1], strides = [1, 1]} : vector<16x16xi32> to vector<16x1xi32>
    %9 = vector.broadcast %8 : vector<16x1xi32> to vector<16x128xi32>
    %10 = arith.cmpi eq, %9, %1 : vector<16x128xi32>
    %11 = arith.extui %10 : vector<16x128xi1> to vector<16x128xi32>
    %12 = arith.sitofp %11 : vector<16x128xi32> to vector<16x128xf32>
    %13 = arith.truncf %12 : vector<16x128xf32> to vector<16x128xbf16>
    %14 = vector.extract_strided_slice %0 {offsets = [0, 2], sizes = [16, 1], strides = [1, 1]} : vector<16x16xi32> to vector<16x1xi32>
    %15 = vector.broadcast %14 : vector<16x1xi32> to vector<16x128xi32>
    %16 = arith.cmpi eq, %15, %1 : vector<16x128xi32>
    %17 = arith.extui %16 : vector<16x128xi1> to vector<16x128xi32>
    %18 = arith.sitofp %17 : vector<16x128xi32> to vector<16x128xf32>
    %19 = arith.truncf %18 : vector<16x128xf32> to vector<16x128xbf16>
    %20 = vector.extract_strided_slice %0 {offsets = [0, 3], sizes = [16, 1], strides = [1, 1]} : vector<16x16xi32> to vector<16x1xi32>
    %21 = vector.broadcast %20 : vector<16x1xi32> to vector<16x128xi32>
    %22 = arith.cmpi eq, %21, %1 : vector<16x128xi32>
    %23 = arith.extui %22 : vector<16x128xi1> to vector<16x128xi32>
    %24 = arith.sitofp %23 : vector<16x128xi32> to vector<16x128xf32>
    %25 = arith.truncf %24 : vector<16x128xf32> to vector<16x128xbf16>
    %26 = vector.extract_strided_slice %0 {offsets = [0, 4], sizes = [16, 1], strides = [1, 1]} : vector<16x16xi32> to vector<16x1xi32>
    %27 = vector.broadcast %26 : vector<16x1xi32> to vector<16x128xi32>
    %28 = arith.cmpi eq, %27, %1 : vector<16x128xi32>
    %29 = arith.extui %28 : vector<16x128xi1> to vector<16x128xi32>
    %30 = arith.sitofp %29 : vector<16x128xi32> to vector<16x128xf32>
    %31 = arith.truncf %30 : vector<16x128xf32> to vector<16x128xbf16>
    %32 = vector.extract_strided_slice %0 {offsets = [0, 5], sizes = [16, 1], strides = [1, 1]} : vector<16x16xi32> to vector<16x1xi32>
    %33 = vector.broadcast %32 : vector<16x1xi32> to vector<16x128xi32>
    %34 = arith.cmpi eq, %33, %1 : vector<16x128xi32>
    %35 = arith.extui %34 : vector<16x128xi1> to vector<16x128xi32>
    %36 = arith.sitofp %35 : vector<16x128xi32> to vector<16x128xf32>
    %37 = arith.truncf %36 : vector<16x128xf32> to vector<16x128xbf16>
    %38 = vector.extract_strided_slice %0 {offsets = [0, 6], sizes = [16, 1], strides = [1, 1]} : vector<16x16xi32> to vector<16x1xi32>
    %39 = vector.broadcast %38 : vector<16x1xi32> to vector<16x128xi32>
    %40 = arith.cmpi eq, %39, %1 : vector<16x128xi32>
    %41 = arith.extui %40 : vector<16x128xi1> to vector<16x128xi32>
    %42 = arith.sitofp %41 : vector<16x128xi32> to vector<16x128xf32>
    %43 = arith.truncf %42 : vector<16x128xf32> to vector<16x128xbf16>
    %44 = vector.extract_strided_slice %0 {offsets = [0, 7], sizes = [16, 1], strides = [1, 1]} : vector<16x16xi32> to vector<16x1xi32>
    %45 = vector.broadcast %44 : vector<16x1xi32> to vector<16x128xi32>
    %46 = arith.cmpi eq, %45, %1 : vector<16x128xi32>
    %47 = arith.extui %46 : vector<16x128xi1> to vector<16x128xi32>
    %48 = arith.sitofp %47 : vector<16x128xi32> to vector<16x128xf32>
    %49 = arith.truncf %48 : vector<16x128xf32> to vector<16x128xbf16>
    %50 = vector.extract_strided_slice %0 {offsets = [0, 8], sizes = [16, 1], strides = [1, 1]} : vector<16x16xi32> to vector<16x1xi32>
    %51 = vector.broadcast %50 : vector<16x1xi32> to vector<16x128xi32>
    %52 = arith.cmpi eq, %51, %1 : vector<16x128xi32>
    %53 = arith.extui %52 : vector<16x128xi1> to vector<16x128xi32>
    %54 = arith.sitofp %53 : vector<16x128xi32> to vector<16x128xf32>
    %55 = arith.truncf %54 : vector<16x128xf32> to vector<16x128xbf16>
    %56 = vector.extract_strided_slice %0 {offsets = [0, 9], sizes = [16, 1], strides = [1, 1]} : vector<16x16xi32> to vector<16x1xi32>
    %57 = vector.broadcast %56 : vector<16x1xi32> to vector<16x128xi32>
    %58 = arith.cmpi eq, %57, %1 : vector<16x128xi32>
    %59 = arith.extui %58 : vector<16x128xi1> to vector<16x128xi32>
    %60 = arith.sitofp %59 : vector<16x128xi32> to vector<16x128xf32>
    %61 = arith.truncf %60 : vector<16x128xf32> to vector<16x128xbf16>
    %62 = vector.extract_strided_slice %0 {offsets = [0, 10], sizes = [16, 1], strides = [1, 1]} : vector<16x16xi32> to vector<16x1xi32>
    %63 = vector.broadcast %62 : vector<16x1xi32> to vector<16x128xi32>
    %64 = arith.cmpi eq, %63, %1 : vector<16x128xi32>
    %65 = arith.extui %64 : vector<16x128xi1> to vector<16x128xi32>
    %66 = arith.sitofp %65 : vector<16x128xi32> to vector<16x128xf32>
    %67 = arith.truncf %66 : vector<16x128xf32> to vector<16x128xbf16>
    %68 = vector.extract_strided_slice %0 {offsets = [0, 11], sizes = [16, 1], strides = [1, 1]} : vector<16x16xi32> to vector<16x1xi32>
    %69 = vector.broadcast %68 : vector<16x1xi32> to vector<16x128xi32>
    %70 = arith.cmpi eq, %69, %1 : vector<16x128xi32>
    %71 = arith.extui %70 : vector<16x128xi1> to vector<16x128xi32>
    %72 = arith.sitofp %71 : vector<16x128xi32> to vector<16x128xf32>
    %73 = arith.truncf %72 : vector<16x128xf32> to vector<16x128xbf16>
    %74 = vector.extract_strided_slice %0 {offsets = [0, 12], sizes = [16, 1], strides = [1, 1]} : vector<16x16xi32> to vector<16x1xi32>
    %75 = vector.broadcast %74 : vector<16x1xi32> to vector<16x128xi32>
    %76 = arith.cmpi eq, %75, %1 : vector<16x128xi32>
    %77 = arith.extui %76 : vector<16x128xi1> to vector<16x128xi32>
    %78 = arith.sitofp %77 : vector<16x128xi32> to vector<16x128xf32>
    %79 = arith.truncf %78 : vector<16x128xf32> to vector<16x128xbf16>
    %80 = vector.extract_strided_slice %0 {offsets = [0, 13], sizes = [16, 1], strides = [1, 1]} : vector<16x16xi32> to vector<16x1xi32>
    %81 = vector.broadcast %80 : vector<16x1xi32> to vector<16x128xi32>
    %82 = arith.cmpi eq, %81, %1 : vector<16x128xi32>
    %83 = arith.extui %82 : vector<16x128xi1> to vector<16x128xi32>
    %84 = arith.sitofp %83 : vector<16x128xi32> to vector<16x128xf32>
    %85 = arith.truncf %84 : vector<16x128xf32> to vector<16x128xbf16>
    %86 = vector.extract_strided_slice %0 {offsets = [0, 14], sizes = [16, 1], strides = [1, 1]} : vector<16x16xi32> to vector<16x1xi32>
    %87 = vector.broadcast %86 : vector<16x1xi32> to vector<16x128xi32>
    %88 = arith.cmpi eq, %87, %1 : vector<16x128xi32>
    %89 = arith.extui %88 : vector<16x128xi1> to vector<16x128xi32>
    %90 = arith.sitofp %89 : vector<16x128xi32> to vector<16x128xf32>
    %91 = arith.truncf %90 : vector<16x128xf32> to vector<16x128xbf16>
    %92 = vector.extract_strided_slice %0 {offsets = [0, 15], sizes = [16, 1], strides = [1, 1]} : vector<16x16xi32> to vector<16x1xi32>
    %93 = vector.broadcast %92 : vector<16x1xi32> to vector<16x128xi32>
    %94 = arith.cmpi eq, %93, %1 : vector<16x128xi32>
    %95 = arith.extui %94 : vector<16x128xi1> to vector<16x128xi32>
    %96 = arith.sitofp %95 : vector<16x128xi32> to vector<16x128xf32>
    %97 = arith.truncf %96 : vector<16x128xf32> to vector<16x128xbf16>
    %c0_1 = arith.constant 0 : index
    %c0_2 = arith.constant 0 : index
    %98 = vector.load %arg6[%c0_1, %c0_2] : memref<224x384xbf16, #tpu.memory_space<vmem>>, vector<16x128xbf16>
    tpu.vector_store %arg6[%c0_1, %c0_2], %7 {strides = array<i32>} : memref<224x384xbf16, #tpu.memory_space<vmem>>, vector<16x128xbf16>,
    %c0_3 = arith.constant 0 : index
    %c128 = arith.constant 128 : index
    %99 = vector.load %arg6[%c0_3, %c128] : memref<224x384xbf16, #tpu.memory_space<vmem>>, vector<16x128xbf16>
    tpu.vector_store %arg6[%c0_3, %c128], %13 {strides = array<i32>} : memref<224x384xbf16, #tpu.memory_space<vmem>>, vector<16x128xbf16>,
    %c0_4 = arith.constant 0 : index
    %c256 = arith.constant 256 : index
    %100 = vector.load %arg6[%c0_4, %c256] : memref<224x384xbf16, #tpu.memory_space<vmem>>, vector<16x128xbf16>
    tpu.vector_store %arg6[%c0_4, %c256], %19 {strides = array<i32>} : memref<224x384xbf16, #tpu.memory_space<vmem>>, vector<16x128xbf16>,
    %c16 = arith.constant 16 : index
    %c0_5 = arith.constant 0 : index
    %101 = vector.load %arg6[%c16, %c0_5] : memref<224x384xbf16, #tpu.memory_space<vmem>>, vector<16x128xbf16>
    tpu.vector_store %arg6[%c16, %c0_5], %13 {strides = array<i32>} : memref<224x384xbf16, #tpu.memory_space<vmem>>, vector<16x128xbf16>,
    %c16_6 = arith.constant 16 : index
    %c128_7 = arith.constant 128 : index
    %102 = vector.load %arg6[%c16_6, %c128_7] : memref<224x384xbf16, #tpu.memory_space<vmem>>, vector<16x128xbf16>
    tpu.vector_store %arg6[%c16_6, %c128_7], %19 {strides = array<i32>} : memref<224x384xbf16, #tpu.memory_space<vmem>>, vector<16x128xbf16>,
    %c16_8 = arith.constant 16 : index
    %c256_9 = arith.constant 256 : index
    %103 = vector.load %arg6[%c16_8, %c256_9] : memref<224x384xbf16, #tpu.memory_space<vmem>>, vector<16x128xbf16>
    tpu.vector_store %arg6[%c16_8, %c256_9], %25 {strides = array<i32>} : memref<224x384xbf16, #tpu.memory_space<vmem>>, vector<16x128xbf16>,
    %c32 = arith.constant 32 : index
    %c0_10 = arith.constant 0 : index
    %104 = vector.load %arg6[%c32, %c0_10] : memref<224x384xbf16, #tpu.memory_space<vmem>>, vector<16x128xbf16>
    tpu.vector_store %arg6[%c32, %c0_10], %19 {strides = array<i32>} : memref<224x384xbf16, #tpu.memory_space<vmem>>, vector<16x128xbf16>,
    %c32_11 = arith.constant 32 : index
    %c128_12 = arith.constant 128 : index
    %105 = vector.load %arg6[%c32_11, %c128_12] : memref<224x384xbf16, #tpu.memory_space<vmem>>, vector<16x128xbf16>
    tpu.vector_store %arg6[%c32_11, %c128_12], %25 {strides = array<i32>} : memref<224x384xbf16, #tpu.memory_space<vmem>>, vector<16x128xbf16>,
    %c32_13 = arith.constant 32 : index
    %c256_14 = arith.constant 256 : index
    %106 = vector.load %arg6[%c32_13, %c256_14] : memref<224x384xbf16, #tpu.memory_space<vmem>>, vector<16x128xbf16>
    tpu.vector_store %arg6[%c32_13, %c256_14], %31 {strides = array<i32>} : memref<224x384xbf16, #tpu.memory_space<vmem>>, vector<16x128xbf16>,
    %c48 = arith.constant 48 : index
    %c0_15 = arith.constant 0 : index
    %107 = vector.load %arg6[%c48, %c0_15] : memref<224x384xbf16, #tpu.memory_space<vmem>>, vector<16x128xbf16>
    tpu.vector_store %arg6[%c48, %c0_15], %25 {strides = array<i32>} : memref<224x384xbf16, #tpu.memory_space<vmem>>, vector<16x128xbf16>,
    %c48_16 = arith.constant 48 : index
    %c128_17 = arith.constant 128 : index
    %108 = vector.load %arg6[%c48_16, %c128_17] : memref<224x384xbf16, #tpu.memory_space<vmem>>, vector<16x128xbf16>
    tpu.vector_store %arg6[%c48_16, %c128_17], %31 {strides = array<i32>} : memref<224x384xbf16, #tpu.memory_space<vmem>>, vector<16x128xbf16>,
    %c48_18 = arith.constant 48 : index
    %c256_19 = arith.constant 256 : index
    %109 = vector.load %arg6[%c48_18, %c256_19] : memref<224x384xbf16, #tpu.memory_space<vmem>>, vector<16x128xbf16>
    tpu.vector_store %arg6[%c48_18, %c256_19], %37 {strides = array<i32>} : memref<224x384xbf16, #tpu.memory_space<vmem>>, vector<16x128xbf16>,
    %c64 = arith.constant 64 : index
    %c0_20 = arith.constant 0 : index
    %110 = vector.load %arg6[%c64, %c0_20] : memref<224x384xbf16, #tpu.memory_space<vmem>>, vector<16x128xbf16>
    tpu.vector_store %arg6[%c64, %c0_20], %31 {strides = array<i32>} : memref<224x384xbf16, #tpu.memory_space<vmem>>, vector<16x128xbf16>,
    %c64_21 = arith.constant 64 : index
    %c128_22 = arith.constant 128 : index
    %111 = vector.load %arg6[%c64_21, %c128_22] : memref<224x384xbf16, #tpu.memory_space<vmem>>, vector<16x128xbf16>
    tpu.vector_store %arg6[%c64_21, %c128_22], %37 {strides = array<i32>} : memref<224x384xbf16, #tpu.memory_space<vmem>>, vector<16x128xbf16>,
    %c64_23 = arith.constant 64 : index
    %c256_24 = arith.constant 256 : index
    %112 = vector.load %arg6[%c64_23, %c256_24] : memref<224x384xbf16, #tpu.memory_space<vmem>>, vector<16x128xbf16>
    tpu.vector_store %arg6[%c64_23, %c256_24], %43 {strides = array<i32>} : memref<224x384xbf16, #tpu.memory_space<vmem>>, vector<16x128xbf16>,
    %c80 = arith.constant 80 : index
    %c0_25 = arith.constant 0 : index
    %113 = vector.load %arg6[%c80, %c0_25] : memref<224x384xbf16, #tpu.memory_space<vmem>>, vector<16x128xbf16>
    tpu.vector_store %arg6[%c80, %c0_25], %37 {strides = array<i32>} : memref<224x384xbf16, #tpu.memory_space<vmem>>, vector<16x128xbf16>,
    %c80_26 = arith.constant 80 : index
    %c128_27 = arith.constant 128 : index
    %114 = vector.load %arg6[%c80_26, %c128_27] : memref<224x384xbf16, #tpu.memory_space<vmem>>, vector<16x128xbf16>
    tpu.vector_store %arg6[%c80_26, %c128_27], %43 {strides = array<i32>} : memref<224x384xbf16, #tpu.memory_space<vmem>>, vector<16x128xbf16>,
    %c80_28 = arith.constant 80 : index
    %c256_29 = arith.constant 256 : index
    %115 = vector.load %arg6[%c80_28, %c256_29] : memref<224x384xbf16, #tpu.memory_space<vmem>>, vector<16x128xbf16>
    tpu.vector_store %arg6[%c80_28, %c256_29], %49 {strides = array<i32>} : memref<224x384xbf16, #tpu.memory_space<vmem>>, vector<16x128xbf16>,
    %c96 = arith.constant 96 : index
    %c0_30 = arith.constant 0 : index
    %116 = vector.load %arg6[%c96, %c0_30] : memref<224x384xbf16, #tpu.memory_space<vmem>>, vector<16x128xbf16>
    tpu.vector_store %arg6[%c96, %c0_30], %43 {strides = array<i32>} : memref<224x384xbf16, #tpu.memory_space<vmem>>, vector<16x128xbf16>,
    %c96_31 = arith.constant 96 : index
    %c128_32 = arith.constant 128 : index
    %117 = vector.load %arg6[%c96_31, %c128_32] : memref<224x384xbf16, #tpu.memory_space<vmem>>, vector<16x128xbf16>
    tpu.vector_store %arg6[%c96_31, %c128_32], %49 {strides = array<i32>} : memref<224x384xbf16, #tpu.memory_space<vmem>>, vector<16x128xbf16>,
    %c96_33 = arith.constant 96 : index
    %c256_34 = arith.constant 256 : index
    %118 = vector.load %arg6[%c96_33, %c256_34] : memref<224x384xbf16, #tpu.memory_space<vmem>>, vector<16x128xbf16>
    tpu.vector_store %arg6[%c96_33, %c256_34], %55 {strides = array<i32>} : memref<224x384xbf16, #tpu.memory_space<vmem>>, vector<16x128xbf16>,
    %c112 = arith.constant 112 : index
    %c0_35 = arith.constant 0 : index
    %119 = vector.load %arg6[%c112, %c0_35] : memref<224x384xbf16, #tpu.memory_space<vmem>>, vector<16x128xbf16>
    tpu.vector_store %arg6[%c112, %c0_35], %49 {strides = array<i32>} : memref<224x384xbf16, #tpu.memory_space<vmem>>, vector<16x128xbf16>,
    %c112_36 = arith.constant 112 : index
    %c128_37 = arith.constant 128 : index
    %120 = vector.load %arg6[%c112_36, %c128_37] : memref<224x384xbf16, #tpu.memory_space<vmem>>, vector<16x128xbf16>
    tpu.vector_store %arg6[%c112_36, %c128_37], %55 {strides = array<i32>} : memref<224x384xbf16, #tpu.memory_space<vmem>>, vector<16x128xbf16>,
    %c112_38 = arith.constant 112 : index
    %c256_39 = arith.constant 256 : index
    %121 = vector.load %arg6[%c112_38, %c256_39] : memref<224x384xbf16, #tpu.memory_space<vmem>>, vector<16x128xbf16>
    tpu.vector_store %arg6[%c112_38, %c256_39], %61 {strides = array<i32>} : memref<224x384xbf16, #tpu.memory_space<vmem>>, vector<16x128xbf16>,
    %c128_40 = arith.constant 128 : index
    %c0_41 = arith.constant 0 : index
    %122 = vector.load %arg6[%c128_40, %c0_41] : memref<224x384xbf16, #tpu.memory_space<vmem>>, vector<16x128xbf16>
    tpu.vector_store %arg6[%c128_40, %c0_41], %55 {strides = array<i32>} : memref<224x384xbf16, #tpu.memory_space<vmem>>, vector<16x128xbf16>,
    %c128_42 = arith.constant 128 : index
    %c128_43 = arith.constant 128 : index
    %123 = vector.load %arg6[%c128_42, %c128_43] : memref<224x384xbf16, #tpu.memory_space<vmem>>, vector<16x128xbf16>
    tpu.vector_store %arg6[%c128_42, %c128_43], %61 {strides = array<i32>} : memref<224x384xbf16, #tpu.memory_space<vmem>>, vector<16x128xbf16>,
    %c128_44 = arith.constant 128 : index
    %c256_45 = arith.constant 256 : index
    %124 = vector.load %arg6[%c128_44, %c256_45] : memref<224x384xbf16, #tpu.memory_space<vmem>>, vector<16x128xbf16>
    tpu.vector_store %arg6[%c128_44, %c256_45], %67 {strides = array<i32>} : memref<224x384xbf16, #tpu.memory_space<vmem>>, vector<16x128xbf16>,
    %c144 = arith.constant 144 : index
    %c0_46 = arith.constant 0 : index
    %125 = vector.load %arg6[%c144, %c0_46] : memref<224x384xbf16, #tpu.memory_space<vmem>>, vector<16x128xbf16>
    tpu.vector_store %arg6[%c144, %c0_46], %61 {strides = array<i32>} : memref<224x384xbf16, #tpu.memory_space<vmem>>, vector<16x128xbf16>,
    %c144_47 = arith.constant 144 : index
    %c128_48 = arith.constant 128 : index
    %126 = vector.load %arg6[%c144_47, %c128_48] : memref<224x384xbf16, #tpu.memory_space<vmem>>, vector<16x128xbf16>
    tpu.vector_store %arg6[%c144_47, %c128_48], %67 {strides = array<i32>} : memref<224x384xbf16, #tpu.memory_space<vmem>>, vector<16x128xbf16>,
    %c144_49 = arith.constant 144 : index
    %c256_50 = arith.constant 256 : index
    %127 = vector.load %arg6[%c144_49, %c256_50] : memref<224x384xbf16, #tpu.memory_space<vmem>>, vector<16x128xbf16>
    tpu.vector_store %arg6[%c144_49, %c256_50], %73 {strides = array<i32>} : memref<224x384xbf16, #tpu.memory_space<vmem>>, vector<16x128xbf16>,
    %c160 = arith.constant 160 : index
    %c0_51 = arith.constant 0 : index
    %128 = vector.load %arg6[%c160, %c0_51] : memref<224x384xbf16, #tpu.memory_space<vmem>>, vector<16x128xbf16>
    tpu.vector_store %arg6[%c160, %c0_51], %67 {strides = array<i32>} : memref<224x384xbf16, #tpu.memory_space<vmem>>, vector<16x128xbf16>,
    %c160_52 = arith.constant 160 : index
    %c128_53 = arith.constant 128 : index
    %129 = vector.load %arg6[%c160_52, %c128_53] : memref<224x384xbf16, #tpu.memory_space<vmem>>, vector<16x128xbf16>
    tpu.vector_store %arg6[%c160_52, %c128_53], %73 {strides = array<i32>} : memref<224x384xbf16, #tpu.memory_space<vmem>>, vector<16x128xbf16>,
    %c160_54 = arith.constant 160 : index
    %c256_55 = arith.constant 256 : index
    %130 = vector.load %arg6[%c160_54, %c256_55] : memref<224x384xbf16, #tpu.memory_space<vmem>>, vector<16x128xbf16>
    tpu.vector_store %arg6[%c160_54, %c256_55], %79 {strides = array<i32>} : memref<224x384xbf16, #tpu.memory_space<vmem>>, vector<16x128xbf16>,
    %c176 = arith.constant 176 : index
    %c0_56 = arith.constant 0 : index
    %131 = vector.load %arg6[%c176, %c0_56] : memref<224x384xbf16, #tpu.memory_space<vmem>>, vector<16x128xbf16>
    tpu.vector_store %arg6[%c176, %c0_56], %73 {strides = array<i32>} : memref<224x384xbf16, #tpu.memory_space<vmem>>, vector<16x128xbf16>,
    %c176_57 = arith.constant 176 : index
    %c128_58 = arith.constant 128 : index
    %132 = vector.load %arg6[%c176_57, %c128_58] : memref<224x384xbf16, #tpu.memory_space<vmem>>, vector<16x128xbf16>
    tpu.vector_store %arg6[%c176_57, %c128_58], %79 {strides = array<i32>} : memref<224x384xbf16, #tpu.memory_space<vmem>>, vector<16x128xbf16>,
    %c176_59 = arith.constant 176 : index
    %c256_60 = arith.constant 256 : index
    %133 = vector.load %arg6[%c176_59, %c256_60] : memref<224x384xbf16, #tpu.memory_space<vmem>>, vector<16x128xbf16>
    tpu.vector_store %arg6[%c176_59, %c256_60], %85 {strides = array<i32>} : memref<224x384xbf16, #tpu.memory_space<vmem>>, vector<16x128xbf16>,
    %c192 = arith.constant 192 : index
    %c0_61 = arith.constant 0 : index
    %134 = vector.load %arg6[%c192, %c0_61] : memref<224x384xbf16, #tpu.memory_space<vmem>>, vector<16x128xbf16>
    tpu.vector_store %arg6[%c192, %c0_61], %79 {strides = array<i32>} : memref<224x384xbf16, #tpu.memory_space<vmem>>, vector<16x128xbf16>,
    %c192_62 = arith.constant 192 : index
    %c128_63 = arith.constant 128 : index
    %135 = vector.load %arg6[%c192_62, %c128_63] : memref<224x384xbf16, #tpu.memory_space<vmem>>, vector<16x128xbf16>
    tpu.vector_store %arg6[%c192_62, %c128_63], %85 {strides = array<i32>} : memref<224x384xbf16, #tpu.memory_space<vmem>>, vector<16x128xbf16>,
    %c192_64 = arith.constant 192 : index
    %c256_65 = arith.constant 256 : index
    %136 = vector.load %arg6[%c192_64, %c256_65] : memref<224x384xbf16, #tpu.memory_space<vmem>>, vector<16x128xbf16>
    tpu.vector_store %arg6[%c192_64, %c256_65], %91 {strides = array<i32>} : memref<224x384xbf16, #tpu.memory_space<vmem>>, vector<16x128xbf16>,
    %c208 = arith.constant 208 : index
    %c0_66 = arith.constant 0 : index
    %137 = vector.load %arg6[%c208, %c0_66] : memref<224x384xbf16, #tpu.memory_space<vmem>>, vector<16x128xbf16>
    tpu.vector_store %arg6[%c208, %c0_66], %85 {strides = array<i32>} : memref<224x384xbf16, #tpu.memory_space<vmem>>, vector<16x128xbf16>,
    %c208_67 = arith.constant 208 : index
    %c128_68 = arith.constant 128 : index
    %138 = vector.load %arg6[%c208_67, %c128_68] : memref<224x384xbf16, #tpu.memory_space<vmem>>, vector<16x128xbf16>
    tpu.vector_store %arg6[%c208_67, %c128_68], %91 {strides = array<i32>} : memref<224x384xbf16, #tpu.memory_space<vmem>>, vector<16x128xbf16>,
    %c208_69 = arith.constant 208 : index
    %c256_70 = arith.constant 256 : index
    %139 = vector.load %arg6[%c208_69, %c256_70] : memref<224x384xbf16, #tpu.memory_space<vmem>>, vector<16x128xbf16>
    tpu.vector_store %arg6[%c208_69, %c256_70], %97 {strides = array<i32>} : memref<224x384xbf16, #tpu.memory_space<vmem>>, vector<16x128xbf16>,
    %c0_71 = arith.constant 0 : index
    %c0_72 = arith.constant 0 : index
    %140 = vector.load %arg6[%c0_71, %c0_72] : memref<224x384xbf16, #tpu.memory_space<vmem>>, vector<224x384xbf16>
    %c0_73 = arith.constant 0 : index
    %c0_74 = arith.constant 0 : index
    %141 = vector.load %arg2[%c0_73, %c0_74] : memref<384x128xbf16, #tpu.memory_space<vmem>>, vector<384x128xbf16>
    %cst = arith.constant dense<0.000000e+00> : vector<224x128xf32>
    %142 = tpu.matmul %140, %141, %cst {dimension_numbers = #tpu.dot_dimension_numbers<[1], [0], [0], [1], [0, 0, 1, 1], [], []>} : vector<224x384xbf16>, vector<384x128xbf16>, vector<224x128xf32> -> vector<224x128xf32>
    %c0_75 = arith.constant 0 : index
    %c0_76 = arith.constant 0 : index
    %143 = vector.load %arg3[%c0_75, %c0_76] : memref<384x128xbf16, #tpu.memory_space<vmem>>, vector<384x128xbf16>
    %cst_77 = arith.constant dense<0.000000e+00> : vector<224x128xf32>
    %144 = tpu.matmul %140, %143, %cst_77 {dimension_numbers = #tpu.dot_dimension_numbers<[1], [0], [0], [1], [0, 0, 1, 1], [], []>} : vector<224x384xbf16>, vector<384x128xbf16>, vector<224x128xf32> -> vector<224x128xf32>
    %145 = arith.addf %142, %144 : vector<224x128xf32>
    %146 = vector.extract_strided_slice %145 {offsets = [0, 0], sizes = [16, 128], strides = [1, 1]} : vector<224x128xf32> to vector<16x128xf32>
    %147 = vector.extract_strided_slice %145 {offsets = [16, 0], sizes = [16, 128], strides = [1, 1]} : vector<224x128xf32> to vector<16x128xf32>
    %148 = arith.maximumf %146, %147 : vector<16x128xf32>
    %149 = vector.extract_strided_slice %145 {offsets = [32, 0], sizes = [16, 128], strides = [1, 1]} : vector<224x128xf32> to vector<16x128xf32>
    %150 = arith.maximumf %148, %149 : vector<16x128xf32>
    %151 = vector.extract_strided_slice %145 {offsets = [48, 0], sizes = [16, 128], strides = [1, 1]} : vector<224x128xf32> to vector<16x128xf32>
    %152 = arith.maximumf %150, %151 : vector<16x128xf32>
    %153 = vector.extract_strided_slice %145 {offsets = [64, 0], sizes = [16, 128], strides = [1, 1]} : vector<224x128xf32> to vector<16x128xf32>
    %154 = arith.maximumf %152, %153 : vector<16x128xf32>
    %155 = vector.extract_strided_slice %145 {offsets = [80, 0], sizes = [16, 128], strides = [1, 1]} : vector<224x128xf32> to vector<16x128xf32>
    %156 = arith.maximumf %154, %155 : vector<16x128xf32>
    %157 = vector.extract_strided_slice %145 {offsets = [96, 0], sizes = [16, 128], strides = [1, 1]} : vector<224x128xf32> to vector<16x128xf32>
    %158 = arith.maximumf %156, %157 : vector<16x128xf32>
    %159 = vector.extract_strided_slice %145 {offsets = [112, 0], sizes = [16, 128], strides = [1, 1]} : vector<224x128xf32> to vector<16x128xf32>
    %160 = arith.maximumf %158, %159 : vector<16x128xf32>
    %161 = vector.extract_strided_slice %145 {offsets = [128, 0], sizes = [16, 128], strides = [1, 1]} : vector<224x128xf32> to vector<16x128xf32>
    %162 = arith.maximumf %160, %161 : vector<16x128xf32>
    %163 = vector.extract_strided_slice %145 {offsets = [144, 0], sizes = [16, 128], strides = [1, 1]} : vector<224x128xf32> to vector<16x128xf32>
    %164 = arith.maximumf %162, %163 : vector<16x128xf32>
    %165 = vector.extract_strided_slice %145 {offsets = [160, 0], sizes = [16, 128], strides = [1, 1]} : vector<224x128xf32> to vector<16x128xf32>
    %166 = arith.maximumf %164, %165 : vector<16x128xf32>
    %167 = vector.extract_strided_slice %145 {offsets = [176, 0], sizes = [16, 128], strides = [1, 1]} : vector<224x128xf32> to vector<16x128xf32>
    %168 = arith.maximumf %166, %167 : vector<16x128xf32>
    %169 = vector.extract_strided_slice %145 {offsets = [192, 0], sizes = [16, 128], strides = [1, 1]} : vector<224x128xf32> to vector<16x128xf32>
    %170 = arith.maximumf %168, %169 : vector<16x128xf32>
    %171 = vector.extract_strided_slice %145 {offsets = [208, 0], sizes = [16, 128], strides = [1, 1]} : vector<224x128xf32> to vector<16x128xf32>
    %172 = arith.maximumf %170, %171 : vector<16x128xf32>
    %c0_78 = arith.constant 0 : index
    %c0_79 = arith.constant 0 : index
    %173 = vector.load %arg4[%c0_78, %c0_79] : memref<1x128xf32, #tpu.memory_space<vmem>>, vector<1x128xf32>
    %174 = vector.broadcast %173 : vector<1x128xf32> to vector<16x128xf32>
    %175 = arith.addf %172, %174 : vector<16x128xf32>
    %cst_80 = arith.constant 0.000000e+00 : f32
    %176 = vector.broadcast %cst_80 : f32 to vector<16x128xf32>
    %177 = arith.maximumf %175, %176 : vector<16x128xf32>
    %c0_81 = arith.constant 0 : index
    %c0_82 = arith.constant 0 : index
    %178 = vector.load %arg5[%c0_81, %c0_82] : memref<16x128xf32, #tpu.memory_space<vmem>>, vector<16x128xf32>
    tpu.vector_store %arg5[%c0_81, %c0_82], %177 {strides = array<i32>} : memref<16x128xf32, #tpu.memory_space<vmem>>, vector<16x128xf32>,
    return
  }
  func.func @transform_0(%arg0: i32) -> (i32, i32) {
    %c0_i32 = arith.constant 0 : i32
    %c0_i32_0 = arith.constant 0 : i32
    return %arg0, %c0_i32 : i32, i32
  }
  func.func @transform_1(%arg0: i32) -> (i32, i32) {
    %c0_i32 = arith.constant 0 : i32
    %c0_i32_0 = arith.constant 0 : i32
    %c0_i32_1 = arith.constant 0 : i32
    return %c0_i32, %c0_i32_0 : i32, i32
  }
  func.func @transform_2(%arg0: i32) -> (i32, i32) {
    %c0_i32 = arith.constant 0 : i32
    %c0_i32_0 = arith.constant 0 : i32
    %c0_i32_1 = arith.constant 0 : i32
    return %c0_i32, %c0_i32_0 : i32, i32
  }
  func.func @transform_3(%arg0: i32) -> (i32, i32) {
    %c0_i32 = arith.constant 0 : i32
    %c0_i32_0 = arith.constant 0 : i32
    %c0_i32_1 = arith.constant 0 : i32
    return %c0_i32, %c0_i32_0 : i32, i32
  }
  func.func @transform_4(%arg0: i32) -> (i32, i32) {
    %c0_i32 = arith.constant 0 : i32
    %c0_i32_0 = arith.constant 0 : i32
    return %arg0, %c0_i32 : i32, i32
  }
}

</mosaic_0001>

<llo_original>
// kernel: tpu_custom_call.1
$region0: #{tpu_custom_call.1}
  #allocation0 [shape = 'u32[]', space=smem, size = 0x4, offset = 0x4, fixed_abs, tag = 'smem constant byte address 0x4 - core index']
  #allocation1 [shape = 'u32[144,128]{1,0:T(1,128)}', space=vmem, size = 0x12000, scoped, tag = 'internal scratch']
  #allocation2 [shape = 'bf16[224,384]{1,0:T(8,128)(2,1)}', space=vmem, size = 0x2a000, scoped, tag = 'scratch operand']
  %s0 = inlined_call_operand.hbm [shape: s32[16,16], index: 0, kind: input, shape index: {}]
  %s1 = inlined_call_operand.hbm [shape: bf16[384,128], index: 1, kind: input, shape index: {}]
  %s2 = inlined_call_operand.hbm [shape: bf16[384,128], index: 2, kind: input, shape index: {}]
  %s3 = inlined_call_operand.vmem [shape: f32[1,128], index: 3, kind: input, shape index: {}]
  %s4 = inlined_call_operand.hbm [shape: f32[16,128], index: 4, kind: output, shape index: {}]
  %s5 = sld [smem:[#allocation0]]
  $region38: #{tpu_custom_call.1} parent=0
    _
  %s7 = ssub.s32 1, %s5
  %s8 = scalar_select 0, %s7, %s5
  $region1: #{tpu_custom_call.1} parent=0
    #allocation3 [shape = 'u8[8192]{0}', space=vmem, size = 0x2000, scoped, tag = 'input window, operand 0, single buffered']
    #allocation4 [shape = 's32[1]{0}', space=sflag, size = 0x4, scoped, tag = 'scoped memory for tpu_custom_call.1']
    #allocation5 [shape = 's32[1]{0}', space=sflag, size = 0x4, scoped, tag = 'scoped memory for tpu_custom_call.1']
    #allocation6 [shape = 'u8[98304]{0}', space=vmem, size = 0x18000, scoped, tag = 'input window, operand 1, single buffered']
    #allocation7 [shape = 's32[1]{0}', space=sflag, size = 0x4, scoped, tag = 'scoped memory for tpu_custom_call.1']
    #allocation8 [shape = 'u8[98304]{0}', space=vmem, size = 0x18000, scoped, tag = 'input window, operand 2, single buffered']
    #allocation9 [shape = 'u8[8192]{0}', space=vmem, size = 0x2000, scoped, tag = 'output window, operand 0, single buffered']
    %9 = vsyncpa [#allocation4], 0
    %10 = vsyncpa [#allocation7], 0
    %11 = vsyncpa [#allocation5], 0
    // Predicated region
    $region2: #{tpu_custom_call.1} parent=1 // pred_check
      _
    $region3: #{tpu_custom_call.1} parent=1 // pred_check_branch
      %13 = sbr.rel (0) target = $region5
    $region4: #{tpu_custom_call.1} parent=1 // pred_region
      %s15 = ssub.s32 256, 256
      %16 = vsyncadd [#allocation4], %s15
      %s17 = sshll.u32 [#allocation3], 4
      %s18 = int_to_ptr.vmem [resolvable:$true] %s17
      %23 = dma.hbm_to_vmem [thread:$0]  %s0, 256, %s18, [#allocation4], 128, 128, 8
    $region5: #{tpu_custom_call.1} parent=1 // pred_fallthru
      _
    // Predicated region
    $region6: #{tpu_custom_call.1} parent=1 // pred_check
      _
    $region7: #{tpu_custom_call.1} parent=1 // pred_check_branch
      %25 = sbr.rel (0) target = $region9
    $region8: #{tpu_custom_call.1} parent=1 // pred_region
      %s27 = ssub.s32 3072, 3072
      %28 = vsyncadd [#allocation7], %s27
      %s29 = sshll.u32 [#allocation6], 4
      %s30 = int_to_ptr.vmem [resolvable:$true] %s29
      %35 = dma.hbm_to_vmem [thread:$0]  %s1, 3072, %s30, [#allocation7], 64, 64, 4
    $region9: #{tpu_custom_call.1} parent=1 // pred_fallthru
      _
    // Predicated region
    $region10: #{tpu_custom_call.1} parent=1 // pred_check
      _
    $region11: #{tpu_custom_call.1} parent=1 // pred_check_branch
      %37 = sbr.rel (0) target = $region13
    $region12: #{tpu_custom_call.1} parent=1 // pred_region
      %s39 = ssub.s32 3072, 3072
      %40 = vsyncadd [#allocation7], %s39
      %s41 = sshll.u32 [#allocation8], 4
      %s42 = int_to_ptr.vmem [resolvable:$true] %s41
      %47 = dma.hbm_to_vmem [thread:$0]  %s2, 3072, %s42, [#allocation7], 64, 64, 4
    $region13: #{tpu_custom_call.1} parent=1 // pred_fallthru
      _
    // Predicated region
    $region14: #{tpu_custom_call.1} parent=1 // pred_check
      _
    $region15: #{tpu_custom_call.1} parent=1 // pred_check_branch
      %49 = sbr.rel (0) target = $region17
    $region16: #{tpu_custom_call.1} parent=1 // pred_region
      _
    $region17: #{tpu_custom_call.1} parent=1 // pred_fallthru
      _
    // Predicated region
    $region18: #{tpu_custom_call.1} parent=1 // pred_check
      _
    $region19: #{tpu_custom_call.1} parent=1 // pred_check_branch
      %51 = sbr.rel (0) target = $region21
    $region20: #{tpu_custom_call.1} parent=1 // pred_region
      %52 = dma.done [#allocation4], 256
    $region21: #{tpu_custom_call.1} parent=1 // pred_fallthru
      _
    // Predicated region
    $region22: #{tpu_custom_call.1} parent=1 // pred_check
      _
    $region23: #{tpu_custom_call.1} parent=1 // pred_check_branch
      %54 = sbr.rel (0) target = $region25
    $region24: #{tpu_custom_call.1} parent=1 // pred_region
      %55 = dma.done [#allocation7], 3072
    $region25: #{tpu_custom_call.1} parent=1 // pred_fallthru
      _
    // Predicated region
    $region26: #{tpu_custom_call.1} parent=1 // pred_check
      _
    $region27: #{tpu_custom_call.1} parent=1 // pred_check_branch
      %57 = sbr.rel (0) target = $region29
    $region28: #{tpu_custom_call.1} parent=1 // pred_region
      %58 = dma.done [#allocation7], 3072
    $region29: #{tpu_custom_call.1} parent=1 // pred_fallthru
      _
    %v60 = vld [vmem:[#allocation3] sm:$0xff]
    %v61 = vld [vmem:[#allocation3 + $0x8] sm:$0xff]
    %v62 = vlaneseq
    %v63 = vand.u32 %v62, 127
    %64 = vset.pattern.permute.xlu0 0
    %65 = vperm.xlu0 %64, %v60
    %v66 = vpop.permute.xlu0 %65
    %67 = vset.pattern.permute.xlu0 0
    %68 = vperm.xlu0 %67, %v61
    %v69 = vpop.permute.xlu0 %68
    %vm70 = vcmp.eq.s32.totalorder %v66, %v63
    %vm71 = vcmp.eq.s32.totalorder %v69, %v63
    %v72 = vsel %vm70, 1, 0
    %v73 = vsel %vm71, 1, 0
    %v74 = vcvt.s32.f32 %v72
    %v75 = vcvt.s32.f32 %v73
    %v76 = vpack.c.bf16 %v75, %v74
    %77 = vset.pattern.permute.xlu0 1
    %78 = vperm.xlu0 %77, %v60
    %v79 = vpop.permute.xlu0 %78
    %80 = vset.pattern.permute.xlu0 1
    %81 = vperm.xlu0 %80, %v61
    %v82 = vpop.permute.xlu0 %81
    %vm83 = vcmp.eq.s32.totalorder %v79, %v63
    %vm84 = vcmp.eq.s32.totalorder %v82, %v63
    %v85 = vsel %vm83, 1, 0
    %v86 = vsel %vm84, 1, 0
    %v87 = vcvt.s32.f32 %v85
    %v88 = vcvt.s32.f32 %v86
    %v89 = vpack.c.bf16 %v88, %v87
    %90 = vset.pattern.permute.xlu0 2
    %91 = vperm.xlu0 %90, %v60
    %v92 = vpop.permute.xlu0 %91
    %93 = vset.pattern.permute.xlu0 2
    %94 = vperm.xlu0 %93, %v61
    %v95 = vpop.permute.xlu0 %94
    %vm96 = vcmp.eq.s32.totalorder %v92, %v63
    %vm97 = vcmp.eq.s32.totalorder %v95, %v63
    %v98 = vsel %vm96, 1, 0
    %v99 = vsel %vm97, 1, 0
    %v100 = vcvt.s32.f32 %v98
    %v101 = vcvt.s32.f32 %v99
    %v102 = vpack.c.bf16 %v101, %v100
    %103 = vset.pattern.permute.xlu0 3
    %104 = vperm.xlu0 %103, %v60
    %v105 = vpop.permute.xlu0 %104
    %106 = vset.pattern.permute.xlu0 3
    %107 = vperm.xlu0 %106, %v61
    %v108 = vpop.permute.xlu0 %107
    %vm109 = vcmp.eq.s32.totalorder %v105, %v63
    %vm110 = vcmp.eq.s32.totalorder %v108, %v63
    %v111 = vsel %vm109, 1, 0
    %v112 = vsel %vm110, 1, 0
    %v113 = vcvt.s32.f32 %v111
    %v114 = vcvt.s32.f32 %v112
    %v115 = vpack.c.bf16 %v114, %v113
    %116 = vset.pattern.permute.xlu0 4
    %117 = vperm.xlu0 %116, %v60
    %v118 = vpop.permute.xlu0 %117
    %119 = vset.pattern.permute.xlu0 4
    %120 = vperm.xlu0 %119, %v61
    %v121 = vpop.permute.xlu0 %120
    %vm122 = vcmp.eq.s32.totalorder %v118, %v63
    %vm123 = vcmp.eq.s32.totalorder %v121, %v63
    %v124 = vsel %vm122, 1, 0
    %v125 = vsel %vm123, 1, 0
    %v126 = vcvt.s32.f32 %v124
    %v127 = vcvt.s32.f32 %v125
    %v128 = vpack.c.bf16 %v127, %v126
    %129 = vset.pattern.permute.xlu0 5
    %130 = vperm.xlu0 %129, %v60
    %v131 = vpop.permute.xlu0 %130
    %132 = vset.pattern.permute.xlu0 5
    %133 = vperm.xlu0 %132, %v61
    %v134 = vpop.permute.xlu0 %133
    %vm135 = vcmp.eq.s32.totalorder %v131, %v63
    %vm136 = vcmp.eq.s32.totalorder %v134, %v63
    %v137 = vsel %vm135, 1, 0
    %v138 = vsel %vm136, 1, 0
    %v139 = vcvt.s32.f32 %v137
    %v140 = vcvt.s32.f32 %v138
    %v141 = vpack.c.bf16 %v140, %v139
    %142 = vset.pattern.permute.xlu0 6
    %143 = vperm.xlu0 %142, %v60
    %v144 = vpop.permute.xlu0 %143
    %145 = vset.pattern.permute.xlu0 6
    %146 = vperm.xlu0 %145, %v61
    %v147 = vpop.permute.xlu0 %146
    %vm148 = vcmp.eq.s32.totalorder %v144, %v63
    %vm149 = vcmp.eq.s32.totalorder %v147, %v63
    %v150 = vsel %vm148, 1, 0
    %v151 = vsel %vm149, 1, 0
    %v152 = vcvt.s32.f32 %v150
    %v153 = vcvt.s32.f32 %v151
    %v154 = vpack.c.bf16 %v153, %v152
    %155 = vset.pattern.permute.xlu0 7
    %156 = vperm.xlu0 %155, %v60
    %v157 = vpop.permute.xlu0 %156
    %158 = vset.pattern.permute.xlu0 7
    %159 = vperm.xlu0 %158, %v61
    %v160 = vpop.permute.xlu0 %159
    %vm161 = vcmp.eq.s32.totalorder %v157, %v63
    %vm162 = vcmp.eq.s32.totalorder %v160, %v63
    %v163 = vsel %vm161, 1, 0
    %v164 = vsel %vm162, 1, 0
    %v165 = vcvt.s32.f32 %v163
    %v166 = vcvt.s32.f32 %v164
    %v167 = vpack.c.bf16 %v166, %v165
    %168 = vset.pattern.permute.xlu0 8
    %169 = vperm.xlu0 %168, %v60
    %v170 = vpop.permute.xlu0 %169
    %171 = vset.pattern.permute.xlu0 8
    %172 = vperm.xlu0 %171, %v61
    %v173 = vpop.permute.xlu0 %172
    %vm174 = vcmp.eq.s32.totalorder %v170, %v63
    %vm175 = vcmp.eq.s32.totalorder %v173, %v63
    %v176 = vsel %vm174, 1, 0
    %v177 = vsel %vm175, 1, 0
    %v178 = vcvt.s32.f32 %v176
    %v179 = vcvt.s32.f32 %v177
    %v180 = vpack.c.bf16 %v179, %v178
    %181 = vset.pattern.permute.xlu0 9
    %182 = vperm.xlu0 %181, %v60
    %v183 = vpop.permute.xlu0 %182
    %184 = vset.pattern.permute.xlu0 9
    %185 = vperm.xlu0 %184, %v61
    %v186 = vpop.permute.xlu0 %185
    %vm187 = vcmp.eq.s32.totalorder %v183, %v63
    %vm188 = vcmp.eq.s32.totalorder %v186, %v63
    %v189 = vsel %vm187, 1, 0
    %v190 = vsel %vm188, 1, 0
    %v191 = vcvt.s32.f32 %v189
    %v192 = vcvt.s32.f32 %v190
    %v193 = vpack.c.bf16 %v192, %v191
    %194 = vset.pattern.permute.xlu0 10
    %195 = vperm.xlu0 %194, %v60
    %v196 = vpop.permute.xlu0 %195
    %197 = vset.pattern.permute.xlu0 10
    %198 = vperm.xlu0 %197, %v61
    %v199 = vpop.permute.xlu0 %198
    %vm200 = vcmp.eq.s32.totalorder %v196, %v63
    %vm201 = vcmp.eq.s32.totalorder %v199, %v63
    %v202 = vsel %vm200, 1, 0
    %v203 = vsel %vm201, 1, 0
    %v204 = vcvt.s32.f32 %v202
    %v205 = vcvt.s32.f32 %v203
    %v206 = vpack.c.bf16 %v205, %v204
    %207 = vset.pattern.permute.xlu0 11
    %208 = vperm.xlu0 %207, %v60
    %v209 = vpop.permute.xlu0 %208
    %210 = vset.pattern.permute.xlu0 11
    %211 = vperm.xlu0 %210, %v61
    %v212 = vpop.permute.xlu0 %211
    %vm213 = vcmp.eq.s32.totalorder %v209, %v63
    %vm214 = vcmp.eq.s32.totalorder %v212, %v63
    %v215 = vsel %vm213, 1, 0
    %v216 = vsel %vm214, 1, 0
    %v217 = vcvt.s32.f32 %v215
    %v218 = vcvt.s32.f32 %v216
    %v219 = vpack.c.bf16 %v218, %v217
    %220 = vset.pattern.permute.xlu0 12
    %221 = vperm.xlu0 %220, %v60
    %v222 = vpop.permute.xlu0 %221
    %223 = vset.pattern.permute.xlu0 12
    %224 = vperm.xlu0 %223, %v61
    %v225 = vpop.permute.xlu0 %224
    %vm226 = vcmp.eq.s32.totalorder %v222, %v63
    %vm227 = vcmp.eq.s32.totalorder %v225, %v63
    %v228 = vsel %vm226, 1, 0
    %v229 = vsel %vm227, 1, 0
    %v230 = vcvt.s32.f32 %v228
    %v231 = vcvt.s32.f32 %v229
    %v232 = vpack.c.bf16 %v231, %v230
    %233 = vset.pattern.permute.xlu0 13
    %234 = vperm.xlu0 %233, %v60
    %v235 = vpop.permute.xlu0 %234
    %236 = vset.pattern.permute.xlu0 13
    %237 = vperm.xlu0 %236, %v61
    %v238 = vpop.permute.xlu0 %237
    %vm239 = vcmp.eq.s32.totalorder %v235, %v63
    %vm240 = vcmp.eq.s32.totalorder %v238, %v63
    %v241 = vsel %vm239, 1, 0
    %v242 = vsel %vm240, 1, 0
    %v243 = vcvt.s32.f32 %v241
    %v244 = vcvt.s32.f32 %v242
    %v245 = vpack.c.bf16 %v244, %v243
    %246 = vset.pattern.permute.xlu0 14
    %247 = vperm.xlu0 %246, %v60
    %v248 = vpop.permute.xlu0 %247
    %249 = vset.pattern.permute.xlu0 14
    %250 = vperm.xlu0 %249, %v61
    %v251 = vpop.permute.xlu0 %250
    %vm252 = vcmp.eq.s32.totalorder %v248, %v63
    %vm253 = vcmp.eq.s32.totalorder %v251, %v63
    %v254 = vsel %vm252, 1, 0
    %v255 = vsel %vm253, 1, 0
    %v256 = vcvt.s32.f32 %v254
    %v257 = vcvt.s32.f32 %v255
    %v258 = vpack.c.bf16 %v257, %v256
    %259 = vset.pattern.permute.xlu0 15
    %260 = vperm.xlu0 %259, %v60
    %v261 = vpop.permute.xlu0 %260
    %262 = vset.pattern.permute.xlu0 15
    %263 = vperm.xlu0 %262, %v61
    %v264 = vpop.permute.xlu0 %263
    %vm265 = vcmp.eq.s32.totalorder %v261, %v63
    %vm266 = vcmp.eq.s32.totalorder %v264, %v63
    %v267 = vsel %vm265, 1, 0
    %v268 = vsel %vm266, 1, 0
    %v269 = vcvt.s32.f32 %v267
    %v270 = vcvt.s32.f32 %v268
    %v271 = vpack.c.bf16 %v270, %v269
    %v273 = vunpack.c.l.b16 %v76
    %v274 = vunpack.c.h.b16 %v76
    %v275 = vpack.c.b16 %v273, %v273
    %v276 = vpack.c.b16 %v274, %v274
    %279 = vst [vmem:[#allocation2] sm:$0xf] %v275
    %280 = vst [vmem:[#allocation2 + $0xc] sm:$0xf] %v276
    %v282 = vunpack.c.l.b16 %v89
    %v283 = vunpack.c.h.b16 %v89
    %v284 = vpack.c.b16 %v282, %v282
    %v285 = vpack.c.b16 %v283, %v283
    %288 = vst [vmem:[#allocation2 + $0x4] sm:$0xf] %v284
    %289 = vst [vmem:[#allocation2 + $0x10] sm:$0xf] %v285
    %v291 = vunpack.c.l.b16 %v102
    %v292 = vunpack.c.h.b16 %v102
    %v293 = vpack.c.b16 %v291, %v291
    %v294 = vpack.c.b16 %v292, %v292
    %297 = vst [vmem:[#allocation2 + $0x8] sm:$0xf] %v293
    %298 = vst [vmem:[#allocation2 + $0x14] sm:$0xf] %v294
    %299 = vst [vmem:[#allocation2 + $0x18] sm:$0xf] %v284
    %300 = vst [vmem:[#allocation2 + $0x24] sm:$0xf] %v285
    %301 = vst [vmem:[#allocation2 + $0x1c] sm:$0xf] %v293
    %302 = vst [vmem:[#allocation2 + $0x28] sm:$0xf] %v294
    %v304 = vunpack.c.l.b16 %v115
    %v305 = vunpack.c.h.b16 %v115
    %v306 = vpack.c.b16 %v304, %v304
    %v307 = vpack.c.b16 %v305, %v305
    %310 = vst [vmem:[#allocation2 + $0x20] sm:$0xf] %v306
    %311 = vst [vmem:[#allocation2 + $0x2c] sm:$0xf] %v307
    %312 = vst [vmem:[#allocation2 + $0x30] sm:$0xf] %v293
    %313 = vst [vmem:[#allocation2 + $0x3c] sm:$0xf] %v294
    %314 = vst [vmem:[#allocation2 + $0x34] sm:$0xf] %v306
    %315 = vst [vmem:[#allocation2 + $0x40] sm:$0xf] %v307
    %v317 = vunpack.c.l.b16 %v128
    %v318 = vunpack.c.h.b16 %v128
    %v319 = vpack.c.b16 %v317, %v317
    %v320 = vpack.c.b16 %v318, %v318
    %323 = vst [vmem:[#allocation2 + $0x38] sm:$0xf] %v319
    %324 = vst [vmem:[#allocation2 + $0x44] sm:$0xf] %v320
    %325 = vst [vmem:[#allocation2 + $0x48] sm:$0xf] %v306
    %326 = vst [vmem:[#allocation2 + $0x54] sm:$0xf] %v307
    %327 = vst [vmem:[#allocation2 + $0x4c] sm:$0xf] %v319
    %328 = vst [vmem:[#allocation2 + $0x58] sm:$0xf] %v320
    %v330 = vunpack.c.l.b16 %v141
    %v331 = vunpack.c.h.b16 %v141
    %v332 = vpack.c.b16 %v330, %v330
    %v333 = vpack.c.b16 %v331, %v331
    %336 = vst [vmem:[#allocation2 + $0x50] sm:$0xf] %v332
    %337 = vst [vmem:[#allocation2 + $0x5c] sm:$0xf] %v333
    %338 = vst [vmem:[#allocation2 + $0x60] sm:$0xf] %v319
    %339 = vst [vmem:[#allocation2 + $0x6c] sm:$0xf] %v320
    %340 = vst [vmem:[#allocation2 + $0x64] sm:$0xf] %v332
    %341 = vst [vmem:[#allocation2 + $0x70] sm:$0xf] %v333
    %v343 = vunpack.c.l.b16 %v154
    %v344 = vunpack.c.h.b16 %v154
    %v345 = vpack.c.b16 %v343, %v343
    %v346 = vpack.c.b16 %v344, %v344
    %349 = vst [vmem:[#allocation2 + $0x68] sm:$0xf] %v345
    %350 = vst [vmem:[#allocation2 + $0x74] sm:$0xf] %v346
    %351 = vst [vmem:[#allocation2 + $0x78] sm:$0xf] %v332
    %352 = vst [vmem:[#allocation2 + $0x84] sm:$0xf] %v333
    %353 = vst [vmem:[#allocation2 + $0x7c] sm:$0xf] %v345
    %354 = vst [vmem:[#allocation2 + $0x88] sm:$0xf] %v346
    %v356 = vunpack.c.l.b16 %v167
    %v357 = vunpack.c.h.b16 %v167
    %v358 = vpack.c.b16 %v356, %v356
    %v359 = vpack.c.b16 %v357, %v357
    %362 = vst [vmem:[#allocation2 + $0x80] sm:$0xf] %v358
    %363 = vst [vmem:[#allocation2 + $0x8c] sm:$0xf] %v359
    %364 = vst [vmem:[#allocation2 + $0x90] sm:$0xf] %v345
    %365 = vst [vmem:[#allocation2 + $0x9c] sm:$0xf] %v346
    %366 = vst [vmem:[#allocation2 + $0x94] sm:$0xf] %v358
    %367 = vst [vmem:[#allocation2 + $0xa0] sm:$0xf] %v359
    %v369 = vunpack.c.l.b16 %v180
    %v370 = vunpack.c.h.b16 %v180
    %v371 = vpack.c.b16 %v369, %v369
    %v372 = vpack.c.b16 %v370, %v370
    %375 = vst [vmem:[#allocation2 + $0x98] sm:$0xf] %v371
    %376 = vst [vmem:[#allocation2 + $0xa4] sm:$0xf] %v372
    %377 = vst [vmem:[#allocation2 + $0xa8] sm:$0xf] %v358
    %378 = vst [vmem:[#allocation2 + $0xb4] sm:$0xf] %v359
    %379 = vst [vmem:[#allocation2 + $0xac] sm:$0xf] %v371
    %380 = vst [vmem:[#allocation2 + $0xb8] sm:$0xf] %v372
    %v382 = vunpack.c.l.b16 %v193
    %v383 = vunpack.c.h.b16 %v193
    %v384 = vpack.c.b16 %v382, %v382
    %v385 = vpack.c.b16 %v383, %v383
    %388 = vst [vmem:[#allocation2 + $0xb0] sm:$0xf] %v384
    %389 = vst [vmem:[#allocation2 + $0xbc] sm:$0xf] %v385
    %390 = vst [vmem:[#allocation2 + $0xc0] sm:$0xf] %v371
    %391 = vst [vmem:[#allocation2 + $0xcc] sm:$0xf] %v372
    %392 = vst [vmem:[#allocation2 + $0xc4] sm:$0xf] %v384
    %393 = vst [vmem:[#allocation2 + $0xd0] sm:$0xf] %v385
    %v395 = vunpack.c.l.b16 %v206
    %v396 = vunpack.c.h.b16 %v206
    %v397 = vpack.c.b16 %v395, %v395
    %v398 = vpack.c.b16 %v396, %v396
    %401 = vst [vmem:[#allocation2 + $0xc8] sm:$0xf] %v397
    %402 = vst [vmem:[#allocation2 + $0xd4] sm:$0xf] %v398
    %403 = vst [vmem:[#allocation2 + $0xd8] sm:$0xf] %v384
    %404 = vst [vmem:[#allocation2 + $0xe4] sm:$0xf] %v385
    %405 = vst [vmem:[#allocation2 + $0xdc] sm:$0xf] %v397
    %406 = vst [vmem:[#allocation2 + $0xe8] sm:$0xf] %v398
    %v408 = vunpack.c.l.b16 %v219
    %v409 = vunpack.c.h.b16 %v219
    %v410 = vpack.c.b16 %v408, %v408
    %v411 = vpack.c.b16 %v409, %v409
    %414 = vst [vmem:[#allocation2 + $0xe0] sm:$0xf] %v410
    %415 = vst [vmem:[#allocation2 + $0xec] sm:$0xf] %v411
    %416 = vst [vmem:[#allocation2 + $0xf0] sm:$0xf] %v397
    %417 = vst [vmem:[#allocation2 + $0xfc] sm:$0xf] %v398
    %418 = vst [vmem:[#allocation2 + $0xf4] sm:$0xf] %v410
    %419 = vst [vmem:[#allocation2 + $0x100] sm:$0xf] %v411
    %v421 = vunpack.c.l.b16 %v232
    %v422 = vunpack.c.h.b16 %v232
    %v423 = vpack.c.b16 %v421, %v421
    %v424 = vpack.c.b16 %v422, %v422
    %427 = vst [vmem:[#allocation2 + $0xf8] sm:$0xf] %v423
    %428 = vst [vmem:[#allocation2 + $0x104] sm:$0xf] %v424
    %429 = vst [vmem:[#allocation2 + $0x108] sm:$0xf] %v410
    %430 = vst [vmem:[#allocation2 + $0x114] sm:$0xf] %v411
    %431 = vst [vmem:[#allocation2 + $0x10c] sm:$0xf] %v423
    %432 = vst [vmem:[#allocation2 + $0x118] sm:$0xf] %v424
    %v434 = vunpack.c.l.b16 %v245
    %v435 = vunpack.c.h.b16 %v245
    %v436 = vpack.c.b16 %v434, %v434
    %v437 = vpack.c.b16 %v435, %v435
    %440 = vst [vmem:[#allocation2 + $0x110] sm:$0xf] %v436
    %441 = vst [vmem:[#allocation2 + $0x11c] sm:$0xf] %v437
    %442 = vst [vmem:[#allocation2 + $0x120] sm:$0xf] %v423
    %443 = vst [vmem:[#allocation2 + $0x12c] sm:$0xf] %v424
    %444 = vst [vmem:[#allocation2 + $0x124] sm:$0xf] %v436
    %445 = vst [vmem:[#allocation2 + $0x130] sm:$0xf] %v437
    %v447 = vunpack.c.l.b16 %v258
    %v448 = vunpack.c.h.b16 %v258
    %v449 = vpack.c.b16 %v447, %v447
    %v450 = vpack.c.b16 %v448, %v448
    %453 = vst [vmem:[#allocation2 + $0x128] sm:$0xf] %v449
    %454 = vst [vmem:[#allocation2 + $0x134] sm:$0xf] %v450
    %455 = vst [vmem:[#allocation2 + $0x138] sm:$0xf] %v436
    %456 = vst [vmem:[#allocation2 + $0x144] sm:$0xf] %v437
    %457 = vst [vmem:[#allocation2 + $0x13c] sm:$0xf] %v449
    %458 = vst [vmem:[#allocation2 + $0x148] sm:$0xf] %v450
    %v460 = vunpack.c.l.b16 %v271
    %v461 = vunpack.c.h.b16 %v271
    %v462 = vpack.c.b16 %v460, %v460
    %v463 = vpack.c.b16 %v461, %v461
    %466 = vst [vmem:[#allocation2 + $0x140] sm:$0xf] %v462
    %467 = vst [vmem:[#allocation2 + $0x14c] sm:$0xf] %v463
    %v468 = vld [vmem:[#allocation2] sm:$0xff]
    %v469 = vld [vmem:[#allocation2 + $0x8] sm:$0xf]
    %v470 = vld [vmem:[#allocation2 + $0xc] sm:$0xff]
    %v471 = vld [vmem:[#allocation2 + $0x14] sm:$0xf]
    %v472 = vld [vmem:[#allocation2 + $0x18] sm:$0xff]
    %v473 = vld [vmem:[#allocation2 + $0x20] sm:$0xf]
    %v474 = vld [vmem:[#allocation2 + $0x24] sm:$0xff]
    %v475 = vld [vmem:[#allocation2 + $0x2c] sm:$0xf]
    %v476 = vld [vmem:[#allocation2 + $0x30] sm:$0xff]
    %v477 = vld [vmem:[#allocation2 + $0x38] sm:$0xf]
    %v478 = vld [vmem:[#allocation2 + $0x3c] sm:$0xff]
    %v479 = vld [vmem:[#allocation2 + $0x44] sm:$0xf]
    %v480 = vld [vmem:[#allocation2 + $0x48] sm:$0xff]
    %v481 = vld [vmem:[#allocation2 + $0x50] sm:$0xf]
    %v482 = vld [vmem:[#allocation2 + $0x54] sm:$0xff]
    %v483 = vld [vmem:[#allocation2 + $0x5c] sm:$0xf]
    %v484 = vld [vmem:[#allocation2 + $0x60] sm:$0xff]
    %v485 = vld [vmem:[#allocation2 + $0x68] sm:$0xf]
    %v486 = vld [vmem:[#allocation2 + $0x6c] sm:$0xff]
    %v487 = vld [vmem:[#allocation2 + $0x74] sm:$0xf]
    %v488 = vld [vmem:[#allocation2 + $0x78] sm:$0xff]
    %v489 = vld [vmem:[#allocation2 + $0x80] sm:$0xf]
    %v490 = vld [vmem:[#allocation2 + $0x84] sm:$0xff]
    %v491 = vld [vmem:[#allocation2 + $0x8c] sm:$0xf]
    %v492 = vld [vmem:[#allocation2 + $0x90] sm:$0xff]
    %v493 = vld [vmem:[#allocation2 + $0x98] sm:$0xf]
    %v494 = vld [vmem:[#allocation2 + $0x9c] sm:$0xff]
    %v495 = vld [vmem:[#allocation2 + $0xa4] sm:$0xf]
    %v496 = vld [vmem:[#allocation2 + $0xa8] sm:$0xff]
    %v497 = vld [vmem:[#allocation2 + $0xb0] sm:$0xf]
    %v498 = vld [vmem:[#allocation2 + $0xb4] sm:$0xff]
    %v499 = vld [vmem:[#allocation2 + $0xbc] sm:$0xf]
    %v500 = vld [vmem:[#allocation2 + $0xc0] sm:$0xff]
    %v501 = vld [vmem:[#allocation2 + $0xc8] sm:$0xf]
    %v502 = vld [vmem:[#allocation2 + $0xcc] sm:$0xff]
    %v503 = vld [vmem:[#allocation2 + $0xd4] sm:$0xf]
    %v504 = vld [vmem:[#allocation2 + $0xd8] sm:$0xff]
    %v505 = vld [vmem:[#allocation2 + $0xe0] sm:$0xf]
    %v506 = vld [vmem:[#allocation2 + $0xe4] sm:$0xff]
    %v507 = vld [vmem:[#allocation2 + $0xec] sm:$0xf]
    %v508 = vld [vmem:[#allocation2 + $0xf0] sm:$0xff]
    %v509 = vld [vmem:[#allocation2 + $0xf8] sm:$0xf]
    %v510 = vld [vmem:[#allocation2 + $0xfc] sm:$0xff]
    %v511 = vld [vmem:[#allocation2 + $0x104] sm:$0xf]
    %v512 = vld [vmem:[#allocation2 + $0x108] sm:$0xff]
    %v513 = vld [vmem:[#allocation2 + $0x110] sm:$0xf]
    %v514 = vld [vmem:[#allocation2 + $0x114] sm:$0xff]
    %v515 = vld [vmem:[#allocation2 + $0x11c] sm:$0xf]
    %v516 = vld [vmem:[#allocation2 + $0x120] sm:$0xff]
    %v517 = vld [vmem:[#allocation2 + $0x128] sm:$0xf]
    %v518 = vld [vmem:[#allocation2 + $0x12c] sm:$0xff]
    %v519 = vld [vmem:[#allocation2 + $0x134] sm:$0xf]
    %v520 = vld [vmem:[#allocation2 + $0x138] sm:$0xff]
    %v521 = vld [vmem:[#allocation2 + $0x140] sm:$0xf]
    %v522 = vld [vmem:[#allocation2 + $0x144] sm:$0xff]
    %v523 = vld [vmem:[#allocation2 + $0x14c] sm:$0xf]
    %v524 = vld [vmem:[#allocation6] sm:$0xf]
    %v525 = vld [vmem:[#allocation6 + $0x4] sm:$0xf]
    %v526 = vld [vmem:[#allocation6 + $0x8] sm:$0xf]
    %v527 = vld [vmem:[#allocation6 + $0xc] sm:$0xf]
    %v528 = vld [vmem:[#allocation6 + $0x10] sm:$0xf]
    %v529 = vld [vmem:[#allocation6 + $0x14] sm:$0xf]
    %v530 = vld [vmem:[#allocation6 + $0x18] sm:$0xf]
    %v531 = vld [vmem:[#allocation6 + $0x1c] sm:$0xf]
    %v532 = vld [vmem:[#allocation6 + $0x20] sm:$0xf]
    %v533 = vld [vmem:[#allocation6 + $0x24] sm:$0xf]
    %v534 = vld [vmem:[#allocation6 + $0x28] sm:$0xf]
    %v535 = vld [vmem:[#allocation6 + $0x2c] sm:$0xf]
    %v536 = vld [vmem:[#allocation6 + $0x30] sm:$0xf]
    %v537 = vld [vmem:[#allocation6 + $0x34] sm:$0xf]
    %v538 = vld [vmem:[#allocation6 + $0x38] sm:$0xf]
    %v539 = vld [vmem:[#allocation6 + $0x3c] sm:$0xf]
    %v540 = vld [vmem:[#allocation6 + $0x40] sm:$0xf]
    %v541 = vld [vmem:[#allocation6 + $0x44] sm:$0xf]
    %v542 = vld [vmem:[#allocation6 + $0x48] sm:$0xf]
    %v543 = vld [vmem:[#allocation6 + $0x4c] sm:$0xf]
    %v544 = vld [vmem:[#allocation6 + $0x50] sm:$0xf]
    %v545 = vld [vmem:[#allocation6 + $0x54] sm:$0xf]
    %v546 = vld [vmem:[#allocation6 + $0x58] sm:$0xf]
    %v547 = vld [vmem:[#allocation6 + $0x5c] sm:$0xf]
    %v548 = vld [vmem:[#allocation6 + $0x60] sm:$0xf]
    %v549 = vld [vmem:[#allocation6 + $0x64] sm:$0xf]
    %v550 = vld [vmem:[#allocation6 + $0x68] sm:$0xf]
    %v551 = vld [vmem:[#allocation6 + $0x6c] sm:$0xf]
    %v552 = vld [vmem:[#allocation6 + $0x70] sm:$0xf]
    %v553 = vld [vmem:[#allocation6 + $0x74] sm:$0xf]
    %v554 = vld [vmem:[#allocation6 + $0x78] sm:$0xf]
    %v555 = vld [vmem:[#allocation6 + $0x7c] sm:$0xf]
    %v556 = vld [vmem:[#allocation6 + $0x80] sm:$0xf]
    %v557 = vld [vmem:[#allocation6 + $0x84] sm:$0xf]
    %v558 = vld [vmem:[#allocation6 + $0x88] sm:$0xf]
    %v559 = vld [vmem:[#allocation6 + $0x8c] sm:$0xf]
    %v560 = vld [vmem:[#allocation6 + $0x90] sm:$0xf]
    %v561 = vld [vmem:[#allocation6 + $0x94] sm:$0xf]
    %v562 = vld [vmem:[#allocation6 + $0x98] sm:$0xf]
    %v563 = vld [vmem:[#allocation6 + $0x9c] sm:$0xf]
    %v564 = vld [vmem:[#allocation6 + $0xa0] sm:$0xf]
    %v565 = vld [vmem:[#allocation6 + $0xa4] sm:$0xf]
    %v566 = vld [vmem:[#allocation6 + $0xa8] sm:$0xf]
    %v567 = vld [vmem:[#allocation6 + $0xac] sm:$0xf]
    %v568 = vld [vmem:[#allocation6 + $0xb0] sm:$0xf]
    %v569 = vld [vmem:[#allocation6 + $0xb4] sm:$0xf]
    %v570 = vld [vmem:[#allocation6 + $0xb8] sm:$0xf]
    %v571 = vld [vmem:[#allocation6 + $0xbc] sm:$0xf]
    %v572 = vld [vmem:[#allocation8] sm:$0xf]
    %v573 = vld [vmem:[#allocation8 + $0x4] sm:$0xf]
    %v574 = vld [vmem:[#allocation8 + $0x8] sm:$0xf]
    %v575 = vld [vmem:[#allocation8 + $0xc] sm:$0xf]
    %v576 = vld [vmem:[#allocation8 + $0x10] sm:$0xf]
    %v577 = vld [vmem:[#allocation8 + $0x14] sm:$0xf]
    %v578 = vld [vmem:[#allocation8 + $0x18] sm:$0xf]
    %v579 = vld [vmem:[#allocation8 + $0x1c] sm:$0xf]
    %v580 = vld [vmem:[#allocation8 + $0x20] sm:$0xf]
    %v581 = vld [vmem:[#allocation8 + $0x24] sm:$0xf]
    %v582 = vld [vmem:[#allocation8 + $0x28] sm:$0xf]
    %v583 = vld [vmem:[#allocation8 + $0x2c] sm:$0xf]
    %v584 = vld [vmem:[#allocation8 + $0x30] sm:$0xf]
    %v585 = vld [vmem:[#allocation8 + $0x34] sm:$0xf]
    %v586 = vld [vmem:[#allocation8 + $0x38] sm:$0xf]
    %v587 = vld [vmem:[#allocation8 + $0x3c] sm:$0xf]
    %v588 = vld [vmem:[#allocation8 + $0x40] sm:$0xf]
    %v589 = vld [vmem:[#allocation8 + $0x44] sm:$0xf]
    %v590 = vld [vmem:[#allocation8 + $0x48] sm:$0xf]
    %v591 = vld [vmem:[#allocation8 + $0x4c] sm:$0xf]
    %v592 = vld [vmem:[#allocation8 + $0x50] sm:$0xf]
    %v593 = vld [vmem:[#allocation8 + $0x54] sm:$0xf]
    %v594 = vld [vmem:[#allocation8 + $0x58] sm:$0xf]
    %v595 = vld [vmem:[#allocation8 + $0x5c] sm:$0xf]
    %v596 = vld [vmem:[#allocation8 + $0x60] sm:$0xf]
    %v597 = vld [vmem:[#allocation8 + $0x64] sm:$0xf]
    %v598 = vld [vmem:[#allocation8 + $0x68] sm:$0xf]
    %v599 = vld [vmem:[#allocation8 + $0x6c] sm:$0xf]
    %v600 = vld [vmem:[#allocation8 + $0x70] sm:$0xf]
    %v601 = vld [vmem:[#allocation8 + $0x74] sm:$0xf]
    %v602 = vld [vmem:[#allocation8 + $0x78] sm:$0xf]
    %v603 = vld [vmem:[#allocation8 + $0x7c] sm:$0xf]
    %v604 = vld [vmem:[#allocation8 + $0x80] sm:$0xf]
    %v605 = vld [vmem:[#allocation8 + $0x84] sm:$0xf]
    %v606 = vld [vmem:[#allocation8 + $0x88] sm:$0xf]
    %v607 = vld [vmem:[#allocation8 + $0x8c] sm:$0xf]
    %v608 = vld [vmem:[#allocation8 + $0x90] sm:$0xf]
    %v609 = vld [vmem:[#allocation8 + $0x94] sm:$0xf]
    %v610 = vld [vmem:[#allocation8 + $0x98] sm:$0xf]
    %v611 = vld [vmem:[#allocation8 + $0x9c] sm:$0xf]
    %v612 = vld [vmem:[#allocation8 + $0xa0] sm:$0xf]
    %v613 = vld [vmem:[#allocation8 + $0xa4] sm:$0xf]
    %v614 = vld [vmem:[#allocation8 + $0xa8] sm:$0xf]
    %v615 = vld [vmem:[#allocation8 + $0xac] sm:$0xf]
    %v616 = vld [vmem:[#allocation8 + $0xb0] sm:$0xf]
    %v617 = vld [vmem:[#allocation8 + $0xb4] sm:$0xf]
    %v618 = vld [vmem:[#allocation8 + $0xb8] sm:$0xf]
    %v619 = vld [vmem:[#allocation8 + $0xbc] sm:$0xf]
    %v676 = vunpack.c.l.b16 %v468
    %v677 = vunpack.c.h.b16 %v468
    %v678 = vunpack.c.l.b16 %v469
    %v679 = vunpack.c.l.b16 %v470
    %v680 = vunpack.c.h.b16 %v470
    %v681 = vunpack.c.l.b16 %v471
    %v682 = vunpack.c.l.b16 %v472
    %v683 = vunpack.c.h.b16 %v472
    %v684 = vunpack.c.l.b16 %v473
    %v685 = vunpack.c.l.b16 %v474
    %v686 = vunpack.c.h.b16 %v474
    %v687 = vunpack.c.l.b16 %v475
    %v688 = vunpack.c.l.b16 %v476
    %v689 = vunpack.c.h.b16 %v476
    %v690 = vunpack.c.l.b16 %v477
    %v691 = vunpack.c.l.b16 %v478
    %v692 = vunpack.c.h.b16 %v478
    %v693 = vunpack.c.l.b16 %v479
    %v694 = vunpack.c.l.b16 %v480
    %v695 = vunpack.c.h.b16 %v480
    %v696 = vunpack.c.l.b16 %v481
    %v697 = vunpack.c.l.b16 %v482
    %v698 = vunpack.c.h.b16 %v482
    %v699 = vunpack.c.l.b16 %v483
    %v700 = vunpack.c.l.b16 %v484
    %v701 = vunpack.c.h.b16 %v484
    %v702 = vunpack.c.l.b16 %v485
    %v703 = vunpack.c.l.b16 %v486
    %v704 = vunpack.c.h.b16 %v486
    %v705 = vunpack.c.l.b16 %v487
    %v706 = vunpack.c.l.b16 %v488
    %v707 = vunpack.c.h.b16 %v488
    %v708 = vunpack.c.l.b16 %v489
    %v709 = vunpack.c.l.b16 %v490
    %v710 = vunpack.c.h.b16 %v490
    %v711 = vunpack.c.l.b16 %v491
    %v712 = vunpack.c.l.b16 %v492
    %v713 = vunpack.c.h.b16 %v492
    %v714 = vunpack.c.l.b16 %v493
    %v715 = vunpack.c.l.b16 %v494
    %v716 = vunpack.c.h.b16 %v494
    %v717 = vunpack.c.l.b16 %v495
    %v718 = vunpack.c.l.b16 %v496
    %v719 = vunpack.c.h.b16 %v496
    %v720 = vunpack.c.l.b16 %v497
    %v721 = vunpack.c.l.b16 %v498
    %v722 = vunpack.c.h.b16 %v498
    %v723 = vunpack.c.l.b16 %v499
    %v724 = vunpack.c.l.b16 %v500
    %v725 = vunpack.c.h.b16 %v500
    %v726 = vunpack.c.l.b16 %v501
    %v727 = vunpack.c.l.b16 %v502
    %v728 = vunpack.c.h.b16 %v502
    %v729 = vunpack.c.l.b16 %v503
    %v730 = vunpack.c.l.b16 %v504
    %v731 = vunpack.c.h.b16 %v504
    %v732 = vunpack.c.l.b16 %v505
    %v733 = vunpack.c.l.b16 %v506
    %v734 = vunpack.c.h.b16 %v506
    %v735 = vunpack.c.l.b16 %v507
    %v736 = vunpack.c.l.b16 %v508
    %v737 = vunpack.c.h.b16 %v508
    %v738 = vunpack.c.l.b16 %v509
    %v739 = vunpack.c.l.b16 %v510
    %v740 = vunpack.c.h.b16 %v510
    %v741 = vunpack.c.l.b16 %v511
    %v742 = vunpack.c.l.b16 %v512
    %v743 = vunpack.c.h.b16 %v512
    %v744 = vunpack.c.l.b16 %v513
    %v745 = vunpack.c.l.b16 %v514
    %v746 = vunpack.c.h.b16 %v514
    %v747 = vunpack.c.l.b16 %v515
    %v748 = vunpack.c.l.b16 %v516
    %v749 = vunpack.c.h.b16 %v516
    %v750 = vunpack.c.l.b16 %v517
    %v751 = vunpack.c.l.b16 %v518
    %v752 = vunpack.c.h.b16 %v518
    %v753 = vunpack.c.l.b16 %v519
    %v754 = vunpack.c.l.b16 %v520
    %v755 = vunpack.c.h.b16 %v520
    %v756 = vunpack.c.l.b16 %v521
    %v757 = vunpack.c.l.b16 %v522
    %v758 = vunpack.c.h.b16 %v522
    %v759 = vunpack.c.l.b16 %v523
    %v760 = vpack.c.b16 %v679, %v676
    %v761 = vpack.c.b16 %v680, %v677
    %v762 = vpack.c.b16 %v681, %v678
    %v763 = vpack.c.b16 %v685, %v682
    %v764 = vpack.c.b16 %v686, %v683
    %v765 = vpack.c.b16 %v687, %v684
    %v766 = vpack.c.b16 %v691, %v688
    %v767 = vpack.c.b16 %v692, %v689
    %v768 = vpack.c.b16 %v693, %v690
    %v769 = vpack.c.b16 %v697, %v694
    %v770 = vpack.c.b16 %v698, %v695
    %v771 = vpack.c.b16 %v699, %v696
    %v772 = vpack.c.b16 %v703, %v700
    %v773 = vpack.c.b16 %v704, %v701
    %v774 = vpack.c.b16 %v705, %v702
    %v775 = vpack.c.b16 %v709, %v706
    %v776 = vpack.c.b16 %v710, %v707
    %v777 = vpack.c.b16 %v711, %v708
    %v778 = vpack.c.b16 %v715, %v712
    %v779 = vpack.c.b16 %v716, %v713
    %v780 = vpack.c.b16 %v717, %v714
    %v781 = vpack.c.b16 %v721, %v718
    %v782 = vpack.c.b16 %v722, %v719
    %v783 = vpack.c.b16 %v723, %v720
    %v784 = vpack.c.b16 %v727, %v724
    %v785 = vpack.c.b16 %v728, %v725
    %v786 = vpack.c.b16 %v729, %v726
    %v787 = vpack.c.b16 %v733, %v730
    %v788 = vpack.c.b16 %v734, %v731
    %v789 = vpack.c.b16 %v735, %v732
    %v790 = vpack.c.b16 %v739, %v736
    %v791 = vpack.c.b16 %v740, %v737
    %v792 = vpack.c.b16 %v741, %v738
    %v793 = vpack.c.b16 %v745, %v742
    %v794 = vpack.c.b16 %v746, %v743
    %v795 = vpack.c.b16 %v747, %v744
    %v796 = vpack.c.b16 %v751, %v748
    %v797 = vpack.c.b16 %v752, %v749
    %v798 = vpack.c.b16 %v753, %v750
    %v799 = vpack.c.b16 %v757, %v754
    %v800 = vpack.c.b16 %v758, %v755
    %v801 = vpack.c.b16 %v759, %v756
    %v892 = vunpack.c.l.b16 %v572
    %v893 = vunpack.c.l.b16 %v573
    %v894 = vunpack.c.l.b16 %v574
    %v895 = vunpack.c.l.b16 %v575
    %v896 = vunpack.c.l.b16 %v576
    %v897 = vunpack.c.l.b16 %v577
    %v898 = vunpack.c.l.b16 %v578
    %v899 = vunpack.c.l.b16 %v579
    %v900 = vunpack.c.l.b16 %v580
    %v901 = vunpack.c.l.b16 %v581
    %v902 = vunpack.c.l.b16 %v582
    %v903 = vunpack.c.l.b16 %v583
    %v904 = vunpack.c.l.b16 %v584
    %v905 = vunpack.c.l.b16 %v585
    %v906 = vunpack.c.l.b16 %v586
    %v907 = vunpack.c.l.b16 %v587
    %v908 = vunpack.c.l.b16 %v588
    %v909 = vunpack.c.l.b16 %v589
    %v910 = vunpack.c.l.b16 %v590
    %v911 = vunpack.c.l.b16 %v591
    %v912 = vunpack.c.l.b16 %v592
    %v913 = vunpack.c.l.b16 %v593
    %v914 = vunpack.c.l.b16 %v594
    %v915 = vunpack.c.l.b16 %v595
    %v916 = vunpack.c.l.b16 %v596
    %v917 = vunpack.c.l.b16 %v597
    %v918 = vunpack.c.l.b16 %v598
    %v919 = vunpack.c.l.b16 %v599
    %v920 = vunpack.c.l.b16 %v600
    %v921 = vunpack.c.l.b16 %v601
    %v922 = vunpack.c.l.b16 %v602
    %v923 = vunpack.c.l.b16 %v603
    %v924 = vunpack.c.l.b16 %v604
    %v925 = vunpack.c.l.b16 %v605
    %v926 = vunpack.c.l.b16 %v606
    %v927 = vunpack.c.l.b16 %v607
    %v928 = vunpack.c.l.b16 %v608
    %v929 = vunpack.c.l.b16 %v609
    %v930 = vunpack.c.l.b16 %v610
    %v931 = vunpack.c.l.b16 %v611
    %v932 = vunpack.c.l.b16 %v612
    %v933 = vunpack.c.l.b16 %v613
    %v934 = vunpack.c.l.b16 %v614
    %v935 = vunpack.c.l.b16 %v615
    %v936 = vunpack.c.l.b16 %v616
    %v937 = vunpack.c.l.b16 %v617
    %v938 = vunpack.c.l.b16 %v618
    %v939 = vunpack.c.l.b16 %v619
    %v940 = vpack.c.b16 %v893, %v892
    %v941 = vpack.c.b16 %v895, %v894
    %v942 = vpack.c.b16 %v897, %v896
    %v943 = vpack.c.b16 %v899, %v898
    %v944 = vpack.c.b16 %v901, %v900
    %v945 = vpack.c.b16 %v903, %v902
    %v946 = vpack.c.b16 %v905, %v904
    %v947 = vpack.c.b16 %v907, %v906
    %v948 = vpack.c.b16 %v909, %v908
    %v949 = vpack.c.b16 %v911, %v910
    %v950 = vpack.c.b16 %v913, %v912
    %v951 = vpack.c.b16 %v915, %v914
    %v952 = vpack.c.b16 %v917, %v916
    %v953 = vpack.c.b16 %v919, %v918
    %v954 = vpack.c.b16 %v921, %v920
    %v955 = vpack.c.b16 %v923, %v922
    %v956 = vpack.c.b16 %v925, %v924
    %v957 = vpack.c.b16 %v927, %v926
    %v958 = vpack.c.b16 %v929, %v928
    %v959 = vpack.c.b16 %v931, %v930
    %v960 = vpack.c.b16 %v933, %v932
    %v961 = vpack.c.b16 %v935, %v934
    %v962 = vpack.c.b16 %v937, %v936
    %v963 = vpack.c.b16 %v939, %v938
    %988 = vmatprep.subr.bf16.mxu0 0
    %989 = vmatpush1.bf16.msra.mxu0 %v947
    %990 = vmatprep.subr.bf16.mxu0 0
    %991 = vmatpush1.bf16.msra.mxu0 %v946
    %992 = vmatprep.subr.bf16.mxu0 0
    %993 = vmatpush1.bf16.msra.mxu0 %v945
    %994 = vmatprep.subr.bf16.mxu0 0
    %995 = vmatpush1.bf16.msra.mxu0 %v944
    %996 = vmatprep.subr.bf16.mxu0 0
    %997 = vmatpush1.bf16.msra.mxu0 %v943
    %998 = vmatprep.subr.bf16.mxu0 0
    %999 = vmatpush1.bf16.msra.mxu0 %v942
    %1000 = vmatprep.subr.bf16.mxu0 0
    %1001 = vmatpush1.bf16.msra.mxu0 %v941
    %1002 = vmatprep.subr.bf16.mxu0 0
    %1003 = vmatpush1.bf16.msra.mxu0 %v940
    %1004 = vmatprep.subr.bf16.mxu0 0
    %1005 = vmatpush2.bf16.msra.mxu0 %v955
    %1006 = vmatprep.subr.bf16.mxu0 0
    %1007 = vmatpush2.bf16.msra.mxu0 %v954
    %1008 = vmatprep.subr.bf16.mxu0 0
    %1009 = vmatpush2.bf16.msra.mxu0 %v953
    %1010 = vmatprep.subr.bf16.mxu0 0
    %1011 = vmatpush2.bf16.msra.mxu0 %v952
    %1012 = vmatprep.subr.bf16.mxu0 0
    %1013 = vmatpush2.bf16.msra.mxu0 %v951
    %1014 = vmatprep.subr.bf16.mxu0 0
    %1015 = vmatpush2.bf16.msra.mxu0 %v950
    %1016 = vmatprep.subr.bf16.mxu0 0
    %1017 = vmatpush2.bf16.msra.mxu0 %v949
    %1018 = vmatprep.subr.bf16.mxu0 0
    %1019 = vmatpush2.bf16.msra.mxu0 %v948
    %1020 = vmatprep.mubr.bf16.mxu0 %v761
    %1021 = vmatmul.mubr.bf16.gmra.mxu0 %v760
    %v1022 = vpop.f32.mrf.mxu0
    %v1023 = vadd.f32 0.0, %v1022
    %v1024 = vpop.f32.mrf.mxu0
    %v1025 = vpop.f32.mrf.mxu0
    %v1026 = vadd.f32 0.0, %v1025
    %v1027 = vpop.f32.mrf.mxu0
    %1028 = vmatprep.mubr.bf16.mxu0 %v764
    %1029 = vmatmul.mubr.bf16.gmra.mxu0 %v763
    %v1030 = vpop.f32.mrf.mxu0
    %v1031 = vadd.f32 0.0, %v1030
    %v1032 = vpop.f32.mrf.mxu0
    %v1033 = vpop.f32.mrf.mxu0
    %v1034 = vadd.f32 0.0, %v1033
    %v1035 = vpop.f32.mrf.mxu0
    %1036 = vmatprep.mubr.bf16.mxu0 %v767
    %1037 = vmatmul.mubr.bf16.gmra.mxu0 %v766
    %v1038 = vpop.f32.mrf.mxu0
    %v1039 = vadd.f32 0.0, %v1038
    %v1040 = vpop.f32.mrf.mxu0
    %v1041 = vpop.f32.mrf.mxu0
    %v1042 = vadd.f32 0.0, %v1041
    %v1043 = vpop.f32.mrf.mxu0
    %1044 = vmatprep.mubr.bf16.mxu0 %v770
    %1045 = vmatmul.mubr.bf16.gmra.mxu0 %v769
    %v1046 = vpop.f32.mrf.mxu0
    %v1047 = vadd.f32 0.0, %v1046
    %v1048 = vpop.f32.mrf.mxu0
    %v1049 = vpop.f32.mrf.mxu0
    %v1050 = vadd.f32 0.0, %v1049
    %v1051 = vpop.f32.mrf.mxu0
    %1052 = vmatprep.mubr.bf16.mxu0 %v773
    %1053 = vmatmul.mubr.bf16.gmra.mxu0 %v772
    %v1054 = vpop.f32.mrf.mxu0
    %v1055 = vadd.f32 0.0, %v1054
    %v1056 = vpop.f32.mrf.mxu0
    %v1057 = vpop.f32.mrf.mxu0
    %v1058 = vadd.f32 0.0, %v1057
    %v1059 = vpop.f32.mrf.mxu0
    %1060 = vmatprep.mubr.bf16.mxu0 %v776
    %1061 = vmatmul.mubr.bf16.gmra.mxu0 %v775
    %v1062 = vpop.f32.mrf.mxu0
    %v1063 = vadd.f32 0.0, %v1062
    %v1064 = vpop.f32.mrf.mxu0
    %v1065 = vpop.f32.mrf.mxu0
    %v1066 = vadd.f32 0.0, %v1065
    %v1067 = vpop.f32.mrf.mxu0
    %1068 = vmatprep.mubr.bf16.mxu0 %v779
    %1069 = vmatmul.mubr.bf16.gmra.mxu0 %v778
    %v1070 = vpop.f32.mrf.mxu0
    %v1071 = vadd.f32 0.0, %v1070
    %v1072 = vpop.f32.mrf.mxu0
    %v1073 = vpop.f32.mrf.mxu0
    %v1074 = vadd.f32 0.0, %v1073
    %v1075 = vpop.f32.mrf.mxu0
    %1076 = vmatprep.mubr.bf16.mxu0 %v782
    %1077 = vmatmul.mubr.bf16.gmra.mxu0 %v781
    %v1078 = vpop.f32.mrf.mxu0
    %v1079 = vadd.f32 0.0, %v1078
    %v1080 = vpop.f32.mrf.mxu0
    %v1081 = vpop.f32.mrf.mxu0
    %v1082 = vadd.f32 0.0, %v1081
    %v1083 = vpop.f32.mrf.mxu0
    %1084 = vmatprep.mubr.bf16.mxu0 %v785
    %1085 = vmatmul.mubr.bf16.gmra.mxu0 %v784
    %v1086 = vpop.f32.mrf.mxu0
    %v1087 = vadd.f32 0.0, %v1086
    %v1088 = vpop.f32.mrf.mxu0
    %v1089 = vpop.f32.mrf.mxu0
    %v1090 = vadd.f32 0.0, %v1089
    %v1091 = vpop.f32.mrf.mxu0
    %1092 = vmatprep.mubr.bf16.mxu0 %v788
    %1093 = vmatmul.mubr.bf16.gmra.mxu0 %v787
    %v1094 = vpop.f32.mrf.mxu0
    %v1095 = vadd.f32 0.0, %v1094
    %v1096 = vpop.f32.mrf.mxu0
    %v1097 = vpop.f32.mrf.mxu0
    %v1098 = vadd.f32 0.0, %v1097
    %v1099 = vpop.f32.mrf.mxu0
    %1100 = vmatprep.mubr.bf16.mxu0 %v791
    %1101 = vmatmul.mubr.bf16.gmra.mxu0 %v790
    %v1102 = vpop.f32.mrf.mxu0
    %v1103 = vadd.f32 0.0, %v1102
    %v1104 = vpop.f32.mrf.mxu0
    %v1105 = vpop.f32.mrf.mxu0
    %v1106 = vadd.f32 0.0, %v1105
    %v1107 = vpop.f32.mrf.mxu0
    %1108 = vmatprep.mubr.bf16.mxu0 %v794
    %1109 = vmatmul.mubr.bf16.gmra.mxu0 %v793
    %v1110 = vpop.f32.mrf.mxu0
    %v1111 = vadd.f32 0.0, %v1110
    %v1112 = vpop.f32.mrf.mxu0
    %v1113 = vpop.f32.mrf.mxu0
    %v1114 = vadd.f32 0.0, %v1113
    %v1115 = vpop.f32.mrf.mxu0
    %1116 = vmatprep.mubr.bf16.mxu0 %v797
    %1117 = vmatmul.mubr.bf16.gmra.mxu0 %v796
    %v1118 = vpop.f32.mrf.mxu0
    %v1119 = vadd.f32 0.0, %v1118
    %v1120 = vpop.f32.mrf.mxu0
    %v1121 = vpop.f32.mrf.mxu0
    %v1122 = vadd.f32 0.0, %v1121
    %v1123 = vpop.f32.mrf.mxu0
    %1124 = vmatprep.mubr.bf16.mxu0 %v800
    %1125 = vmatmul.mubr.bf16.gmra.mxu0 %v799
    %v1126 = vpop.f32.mrf.mxu0
    %v1127 = vadd.f32 0.0, %v1126
    %v1128 = vpop.f32.mrf.mxu0
    %v1129 = vpop.f32.mrf.mxu0
    %v1130 = vadd.f32 0.0, %v1129
    %v1131 = vpop.f32.mrf.mxu0
    %1132 = vdwg.mxu0
    %1133 = vmatprep.subr.bf16.mxu0 0
    %1134 = vmatpush1.bf16.msra.mxu0 %v963
    %1135 = vmatprep.subr.bf16.mxu0 0
    %1136 = vmatpush1.bf16.msra.mxu0 %v962
    %1137 = vmatprep.subr.bf16.mxu0 0
    %1138 = vmatpush1.bf16.msra.mxu0 %v961
    %1139 = vmatprep.subr.bf16.mxu0 0
    %1140 = vmatpush1.bf16.msra.mxu0 %v960
    %1141 = vmatprep.subr.bf16.mxu0 0
    %1142 = vmatpush1.bf16.msra.mxu0 %v959
    %1143 = vmatprep.subr.bf16.mxu0 0
    %1144 = vmatpush1.bf16.msra.mxu0 %v958
    %1145 = vmatprep.subr.bf16.mxu0 0
    %1146 = vmatpush1.bf16.msra.mxu0 %v957
    %1147 = vmatprep.subr.bf16.mxu0 0
    %1148 = vmatpush1.bf16.msra.mxu0 %v956
    %1149 = vmatprep.subr.bf16.mxu0 0
    %1150 = vmatpush2.bf16.msra.mxu0 0
    %1151 = vmatprep.subr.bf16.mxu0 0
    %1152 = vmatpush2.bf16.msra.mxu0 0
    %1153 = vmatprep.subr.bf16.mxu0 0
    %1154 = vmatpush2.bf16.msra.mxu0 0
    %1155 = vmatprep.subr.bf16.mxu0 0
    %1156 = vmatpush2.bf16.msra.mxu0 0
    %1157 = vmatprep.subr.bf16.mxu0 0
    %1158 = vmatpush2.bf16.msra.mxu0 0
    %1159 = vmatprep.subr.bf16.mxu0 0
    %1160 = vmatpush2.bf16.msra.mxu0 0
    %1161 = vmatprep.subr.bf16.mxu0 0
    %1162 = vmatpush2.bf16.msra.mxu0 0
    %1163 = vmatprep.subr.bf16.mxu0 0
    %1164 = vmatpush2.bf16.msra.mxu0 0
    %1165 = vmatprep.mubr.bf16.mxu0 0
    %1166 = vmatmul.mubr.bf16.gmra.mxu0 %v762
    %v1167 = vpop.f32.mrf.mxu0
    %v1168 = vadd.f32 %v1023, %v1167
    %v1169 = vpop.f32.mrf.mxu0
    %v1170 = vpop.f32.mrf.mxu0
    %v1171 = vadd.f32 %v1026, %v1170
    %v1172 = vpop.f32.mrf.mxu0
    %1173 = vmatprep.mubr.bf16.mxu0 0
    %1174 = vmatmul.mubr.bf16.gmra.mxu0 %v765
    %v1175 = vpop.f32.mrf.mxu0
    %v1176 = vadd.f32 %v1031, %v1175
    %v1177 = vpop.f32.mrf.mxu0
    %v1178 = vpop.f32.mrf.mxu0
    %v1179 = vadd.f32 %v1034, %v1178
    %v1180 = vpop.f32.mrf.mxu0
    %1181 = vmatprep.mubr.bf16.mxu0 0
    %1182 = vmatmul.mubr.bf16.gmra.mxu0 %v768
    %v1183 = vpop.f32.mrf.mxu0
    %v1184 = vadd.f32 %v1039, %v1183
    %v1185 = vpop.f32.mrf.mxu0
    %v1186 = vpop.f32.mrf.mxu0
    %v1187 = vadd.f32 %v1042, %v1186
    %v1188 = vpop.f32.mrf.mxu0
    %1189 = vmatprep.mubr.bf16.mxu0 0
    %1190 = vmatmul.mubr.bf16.gmra.mxu0 %v771
    %v1191 = vpop.f32.mrf.mxu0
    %v1192 = vadd.f32 %v1047, %v1191
    %v1193 = vpop.f32.mrf.mxu0
    %v1194 = vpop.f32.mrf.mxu0
    %v1195 = vadd.f32 %v1050, %v1194
    %v1196 = vpop.f32.mrf.mxu0
    %1197 = vmatprep.mubr.bf16.mxu0 0
    %1198 = vmatmul.mubr.bf16.gmra.mxu0 %v774
    %v1199 = vpop.f32.mrf.mxu0
    %v1200 = vadd.f32 %v1055, %v1199
    %v1201 = vpop.f32.mrf.mxu0
    %v1202 = vpop.f32.mrf.mxu0
    %v1203 = vadd.f32 %v1058, %v1202
    %v1204 = vpop.f32.mrf.mxu0
    %1205 = vmatprep.mubr.bf16.mxu0 0
    %1206 = vmatmul.mubr.bf16.gmra.mxu0 %v777
    %v1207 = vpop.f32.mrf.mxu0
    %v1208 = vadd.f32 %v1063, %v1207
    %v1209 = vpop.f32.mrf.mxu0
    %v1210 = vpop.f32.mrf.mxu0
    %v1211 = vadd.f32 %v1066, %v1210
    %v1212 = vpop.f32.mrf.mxu0
    %1213 = vmatprep.mubr.bf16.mxu0 0
    %1214 = vmatmul.mubr.bf16.gmra.mxu0 %v780
    %v1215 = vpop.f32.mrf.mxu0
    %v1216 = vadd.f32 %v1071, %v1215
    %v1217 = vpop.f32.mrf.mxu0
    %v1218 = vpop.f32.mrf.mxu0
    %v1219 = vadd.f32 %v1074, %v1218
    %v1220 = vpop.f32.mrf.mxu0
    %1221 = vmatprep.mubr.bf16.mxu0 0
    %1222 = vmatmul.mubr.bf16.gmra.mxu0 %v783
    %v1223 = vpop.f32.mrf.mxu0
    %v1224 = vadd.f32 %v1079, %v1223
    %v1225 = vpop.f32.mrf.mxu0
    %v1226 = vpop.f32.mrf.mxu0
    %v1227 = vadd.f32 %v1082, %v1226
    %v1228 = vpop.f32.mrf.mxu0
    %1229 = vmatprep.mubr.bf16.mxu0 0
    %1230 = vmatmul.mubr.bf16.gmra.mxu0 %v786
    %v1231 = vpop.f32.mrf.mxu0
    %v1232 = vadd.f32 %v1087, %v1231
    %v1233 = vpop.f32.mrf.mxu0
    %v1234 = vpop.f32.mrf.mxu0
    %v1235 = vadd.f32 %v1090, %v1234
    %v1236 = vpop.f32.mrf.mxu0
    %1237 = vmatprep.mubr.bf16.mxu0 0
    %1238 = vmatmul.mubr.bf16.gmra.mxu0 %v789
    %v1239 = vpop.f32.mrf.mxu0
    %v1240 = vadd.f32 %v1095, %v1239
    %v1241 = vpop.f32.mrf.mxu0
    %v1242 = vpop.f32.mrf.mxu0
    %v1243 = vadd.f32 %v1098, %v1242
    %v1244 = vpop.f32.mrf.mxu0
    %1245 = vmatprep.mubr.bf16.mxu0 0
    %1246 = vmatmul.mubr.bf16.gmra.mxu0 %v792
    %v1247 = vpop.f32.mrf.mxu0
    %v1248 = vadd.f32 %v1103, %v1247
    %v1249 = vpop.f32.mrf.mxu0
    %v1250 = vpop.f32.mrf.mxu0
    %v1251 = vadd.f32 %v1106, %v1250
    %v1252 = vpop.f32.mrf.mxu0
    %1253 = vmatprep.mubr.bf16.mxu0 0
    %1254 = vmatmul.mubr.bf16.gmra.mxu0 %v795
    %v1255 = vpop.f32.mrf.mxu0
    %v1256 = vadd.f32 %v1111, %v1255
    %v1257 = vpop.f32.mrf.mxu0
    %v1258 = vpop.f32.mrf.mxu0
    %v1259 = vadd.f32 %v1114, %v1258
    %v1260 = vpop.f32.mrf.mxu0
    %1261 = vmatprep.mubr.bf16.mxu0 0
    %1262 = vmatmul.mubr.bf16.gmra.mxu0 %v798
    %v1263 = vpop.f32.mrf.mxu0
    %v1264 = vadd.f32 %v1119, %v1263
    %v1265 = vpop.f32.mrf.mxu0
    %v1266 = vpop.f32.mrf.mxu0
    %v1267 = vadd.f32 %v1122, %v1266
    %v1268 = vpop.f32.mrf.mxu0
    %1269 = vmatprep.mubr.bf16.mxu0 0
    %1270 = vmatmul.mubr.bf16.gmra.mxu0 %v801
    %v1271 = vpop.f32.mrf.mxu0
    %v1272 = vadd.f32 %v1127, %v1271
    %v1273 = vpop.f32.mrf.mxu0
    %v1274 = vpop.f32.mrf.mxu0
    %v1275 = vadd.f32 %v1130, %v1274
    %v1276 = vpop.f32.mrf.mxu0
    %1277 = vdwg.mxu0
    %v1326 = vunpack.c.l.b16 %v524
    %v1327 = vunpack.c.l.b16 %v525
    %v1328 = vunpack.c.l.b16 %v526
    %v1329 = vunpack.c.l.b16 %v527
    %v1330 = vunpack.c.l.b16 %v528
    %v1331 = vunpack.c.l.b16 %v529
    %v1332 = vunpack.c.l.b16 %v530
    %v1333 = vunpack.c.l.b16 %v531
    %v1334 = vunpack.c.l.b16 %v532
    %v1335 = vunpack.c.l.b16 %v533
    %v1336 = vunpack.c.l.b16 %v534
    %v1337 = vunpack.c.l.b16 %v535
    %v1338 = vunpack.c.l.b16 %v536
    %v1339 = vunpack.c.l.b16 %v537
    %v1340 = vunpack.c.l.b16 %v538
    %v1341 = vunpack.c.l.b16 %v539
    %v1342 = vunpack.c.l.b16 %v540
    %v1343 = vunpack.c.l.b16 %v541
    %v1344 = vunpack.c.l.b16 %v542
    %v1345 = vunpack.c.l.b16 %v543
    %v1346 = vunpack.c.l.b16 %v544
    %v1347 = vunpack.c.l.b16 %v545
    %v1348 = vunpack.c.l.b16 %v546
    %v1349 = vunpack.c.l.b16 %v547
    %v1350 = vunpack.c.l.b16 %v548
    %v1351 = vunpack.c.l.b16 %v549
    %v1352 = vunpack.c.l.b16 %v550
    %v1353 = vunpack.c.l.b16 %v551
    %v1354 = vunpack.c.l.b16 %v552
    %v1355 = vunpack.c.l.b16 %v553
    %v1356 = vunpack.c.l.b16 %v554
    %v1357 = vunpack.c.l.b16 %v555
    %v1358 = vunpack.c.l.b16 %v556
    %v1359 = vunpack.c.l.b16 %v557
    %v1360 = vunpack.c.l.b16 %v558
    %v1361 = vunpack.c.l.b16 %v559
    %v1362 = vunpack.c.l.b16 %v560
    %v1363 = vunpack.c.l.b16 %v561
    %v1364 = vunpack.c.l.b16 %v562
    %v1365 = vunpack.c.l.b16 %v563
    %v1366 = vunpack.c.l.b16 %v564
    %v1367 = vunpack.c.l.b16 %v565
    %v1368 = vunpack.c.l.b16 %v566
    %v1369 = vunpack.c.l.b16 %v567
    %v1370 = vunpack.c.l.b16 %v568
    %v1371 = vunpack.c.l.b16 %v569
    %v1372 = vunpack.c.l.b16 %v570
    %v1373 = vunpack.c.l.b16 %v571
    %v1374 = vpack.c.b16 %v1327, %v1326
    %v1375 = vpack.c.b16 %v1329, %v1328
    %v1376 = vpack.c.b16 %v1331, %v1330
    %v1377 = vpack.c.b16 %v1333, %v1332
    %v1378 = vpack.c.b16 %v1335, %v1334
    %v1379 = vpack.c.b16 %v1337, %v1336
    %v1380 = vpack.c.b16 %v1339, %v1338
    %v1381 = vpack.c.b16 %v1341, %v1340
    %v1382 = vpack.c.b16 %v1343, %v1342
    %v1383 = vpack.c.b16 %v1345, %v1344
    %v1384 = vpack.c.b16 %v1347, %v1346
    %v1385 = vpack.c.b16 %v1349, %v1348
    %v1386 = vpack.c.b16 %v1351, %v1350
    %v1387 = vpack.c.b16 %v1353, %v1352
    %v1388 = vpack.c.b16 %v1355, %v1354
    %v1389 = vpack.c.b16 %v1357, %v1356
    %v1390 = vpack.c.b16 %v1359, %v1358
    %v1391 = vpack.c.b16 %v1361, %v1360
    %v1392 = vpack.c.b16 %v1363, %v1362
    %v1393 = vpack.c.b16 %v1365, %v1364
    %v1394 = vpack.c.b16 %v1367, %v1366
    %v1395 = vpack.c.b16 %v1369, %v1368
    %v1396 = vpack.c.b16 %v1371, %v1370
    %v1397 = vpack.c.b16 %v1373, %v1372
    %1422 = vmatprep.subr.bf16.mxu0 0
    %1423 = vmatpush1.bf16.msra.mxu0 %v1381
    %1424 = vmatprep.subr.bf16.mxu0 0
    %1425 = vmatpush1.bf16.msra.mxu0 %v1380
    %1426 = vmatprep.subr.bf16.mxu0 0
    %1427 = vmatpush1.bf16.msra.mxu0 %v1379
    %1428 = vmatprep.subr.bf16.mxu0 0
    %1429 = vmatpush1.bf16.msra.mxu0 %v1378
    %1430 = vmatprep.subr.bf16.mxu0 0
    %1431 = vmatpush1.bf16.msra.mxu0 %v1377
    %1432 = vmatprep.subr.bf16.mxu0 0
    %1433 = vmatpush1.bf16.msra.mxu0 %v1376
    %1434 = vmatprep.subr.bf16.mxu0 0
    %1435 = vmatpush1.bf16.msra.mxu0 %v1375
    %1436 = vmatprep.subr.bf16.mxu0 0
    %1437 = vmatpush1.bf16.msra.mxu0 %v1374
    %1438 = vmatprep.subr.bf16.mxu0 0
    %1439 = vmatpush2.bf16.msra.mxu0 %v1389
    %1440 = vmatprep.subr.bf16.mxu0 0
    %1441 = vmatpush2.bf16.msra.mxu0 %v1388
    %1442 = vmatprep.subr.bf16.mxu0 0
    %1443 = vmatpush2.bf16.msra.mxu0 %v1387
    %1444 = vmatprep.subr.bf16.mxu0 0
    %1445 = vmatpush2.bf16.msra.mxu0 %v1386
    %1446 = vmatprep.subr.bf16.mxu0 0
    %1447 = vmatpush2.bf16.msra.mxu0 %v1385
    %1448 = vmatprep.subr.bf16.mxu0 0
    %1449 = vmatpush2.bf16.msra.mxu0 %v1384
    %1450 = vmatprep.subr.bf16.mxu0 0
    %1451 = vmatpush2.bf16.msra.mxu0 %v1383
    %1452 = vmatprep.subr.bf16.mxu0 0
    %1453 = vmatpush2.bf16.msra.mxu0 %v1382
    %1454 = vmatprep.mubr.bf16.mxu0 %v761
    %1455 = vmatmul.mubr.bf16.gmra.mxu0 %v760
    %v1456 = vpop.f32.mrf.mxu0
    %v1457 = vadd.f32 %v1168, %v1456
    %v1458 = vpop.f32.mrf.mxu0
    %v1459 = vpop.f32.mrf.mxu0
    %v1460 = vadd.f32 %v1171, %v1459
    %v1461 = vpop.f32.mrf.mxu0
    %1462 = vmatprep.mubr.bf16.mxu0 %v764
    %1463 = vmatmul.mubr.bf16.gmra.mxu0 %v763
    %v1464 = vpop.f32.mrf.mxu0
    %v1465 = vadd.f32 %v1176, %v1464
    %v1466 = vpop.f32.mrf.mxu0
    %v1467 = vpop.f32.mrf.mxu0
    %v1468 = vadd.f32 %v1179, %v1467
    %v1469 = vpop.f32.mrf.mxu0
    %1470 = vmatprep.mubr.bf16.mxu0 %v767
    %1471 = vmatmul.mubr.bf16.gmra.mxu0 %v766
    %v1472 = vpop.f32.mrf.mxu0
    %v1473 = vadd.f32 %v1184, %v1472
    %v1474 = vpop.f32.mrf.mxu0
    %v1475 = vpop.f32.mrf.mxu0
    %v1476 = vadd.f32 %v1187, %v1475
    %v1477 = vpop.f32.mrf.mxu0
    %1478 = vmatprep.mubr.bf16.mxu0 %v770
    %1479 = vmatmul.mubr.bf16.gmra.mxu0 %v769
    %v1480 = vpop.f32.mrf.mxu0
    %v1481 = vadd.f32 %v1192, %v1480
    %v1482 = vpop.f32.mrf.mxu0
    %v1483 = vpop.f32.mrf.mxu0
    %v1484 = vadd.f32 %v1195, %v1483
    %v1485 = vpop.f32.mrf.mxu0
    %1486 = vmatprep.mubr.bf16.mxu0 %v773
    %1487 = vmatmul.mubr.bf16.gmra.mxu0 %v772
    %v1488 = vpop.f32.mrf.mxu0
    %v1489 = vadd.f32 %v1200, %v1488
    %v1490 = vpop.f32.mrf.mxu0
    %v1491 = vpop.f32.mrf.mxu0
    %v1492 = vadd.f32 %v1203, %v1491
    %v1493 = vpop.f32.mrf.mxu0
    %1494 = vmatprep.mubr.bf16.mxu0 %v776
    %1495 = vmatmul.mubr.bf16.gmra.mxu0 %v775
    %v1496 = vpop.f32.mrf.mxu0
    %v1497 = vadd.f32 %v1208, %v1496
    %v1498 = vpop.f32.mrf.mxu0
    %v1499 = vpop.f32.mrf.mxu0
    %v1500 = vadd.f32 %v1211, %v1499
    %v1501 = vpop.f32.mrf.mxu0
    %1502 = vmatprep.mubr.bf16.mxu0 %v779
    %1503 = vmatmul.mubr.bf16.gmra.mxu0 %v778
    %v1504 = vpop.f32.mrf.mxu0
    %v1505 = vadd.f32 %v1216, %v1504
    %v1506 = vpop.f32.mrf.mxu0
    %v1507 = vpop.f32.mrf.mxu0
    %v1508 = vadd.f32 %v1219, %v1507
    %v1509 = vpop.f32.mrf.mxu0
    %1510 = vmatprep.mubr.bf16.mxu0 %v782
    %1511 = vmatmul.mubr.bf16.gmra.mxu0 %v781
    %v1512 = vpop.f32.mrf.mxu0
    %v1513 = vadd.f32 %v1224, %v1512
    %v1514 = vpop.f32.mrf.mxu0
    %v1515 = vpop.f32.mrf.mxu0
    %v1516 = vadd.f32 %v1227, %v1515
    %v1517 = vpop.f32.mrf.mxu0
    %1518 = vmatprep.mubr.bf16.mxu0 %v785
    %1519 = vmatmul.mubr.bf16.gmra.mxu0 %v784
    %v1520 = vpop.f32.mrf.mxu0
    %v1521 = vadd.f32 %v1232, %v1520
    %v1522 = vpop.f32.mrf.mxu0
    %v1523 = vpop.f32.mrf.mxu0
    %v1524 = vadd.f32 %v1235, %v1523
    %v1525 = vpop.f32.mrf.mxu0
    %1526 = vmatprep.mubr.bf16.mxu0 %v788
    %1527 = vmatmul.mubr.bf16.gmra.mxu0 %v787
    %v1528 = vpop.f32.mrf.mxu0
    %v1529 = vadd.f32 %v1240, %v1528
    %v1530 = vpop.f32.mrf.mxu0
    %v1531 = vpop.f32.mrf.mxu0
    %v1532 = vadd.f32 %v1243, %v1531
    %v1533 = vpop.f32.mrf.mxu0
    %1534 = vmatprep.mubr.bf16.mxu0 %v791
    %1535 = vmatmul.mubr.bf16.gmra.mxu0 %v790
    %v1536 = vpop.f32.mrf.mxu0
    %v1537 = vadd.f32 %v1248, %v1536
    %v1538 = vpop.f32.mrf.mxu0
    %v1539 = vpop.f32.mrf.mxu0
    %v1540 = vadd.f32 %v1251, %v1539
    %v1541 = vpop.f32.mrf.mxu0
    %1542 = vmatprep.mubr.bf16.mxu0 %v794
    %1543 = vmatmul.mubr.bf16.gmra.mxu0 %v793
    %v1544 = vpop.f32.mrf.mxu0
    %v1545 = vadd.f32 %v1256, %v1544
    %v1546 = vpop.f32.mrf.mxu0
    %v1547 = vpop.f32.mrf.mxu0
    %v1548 = vadd.f32 %v1259, %v1547
    %v1549 = vpop.f32.mrf.mxu0
    %1550 = vmatprep.mubr.bf16.mxu0 %v797
    %1551 = vmatmul.mubr.bf16.gmra.mxu0 %v796
    %v1552 = vpop.f32.mrf.mxu0
    %v1553 = vadd.f32 %v1264, %v1552
    %v1554 = vpop.f32.mrf.mxu0
    %v1555 = vpop.f32.mrf.mxu0
    %v1556 = vadd.f32 %v1267, %v1555
    %v1557 = vpop.f32.mrf.mxu0
    %1558 = vmatprep.mubr.bf16.mxu0 %v800
    %1559 = vmatmul.mubr.bf16.gmra.mxu0 %v799
    %v1560 = vpop.f32.mrf.mxu0
    %v1561 = vadd.f32 %v1272, %v1560
    %v1562 = vpop.f32.mrf.mxu0
    %v1563 = vpop.f32.mrf.mxu0
    %v1564 = vadd.f32 %v1275, %v1563
    %v1565 = vpop.f32.mrf.mxu0
    %1566 = vdwg.mxu0
    %1567 = vmatprep.subr.bf16.mxu0 0
    %1568 = vmatpush1.bf16.msra.mxu0 %v1397
    %1569 = vmatprep.subr.bf16.mxu0 0
    %1570 = vmatpush1.bf16.msra.mxu0 %v1396
    %1571 = vmatprep.subr.bf16.mxu0 0
    %1572 = vmatpush1.bf16.msra.mxu0 %v1395
    %1573 = vmatprep.subr.bf16.mxu0 0
    %1574 = vmatpush1.bf16.msra.mxu0 %v1394
    %1575 = vmatprep.subr.bf16.mxu0 0
    %1576 = vmatpush1.bf16.msra.mxu0 %v1393
    %1577 = vmatprep.subr.bf16.mxu0 0
    %1578 = vmatpush1.bf16.msra.mxu0 %v1392
    %1579 = vmatprep.subr.bf16.mxu0 0
    %1580 = vmatpush1.bf16.msra.mxu0 %v1391
    %1581 = vmatprep.subr.bf16.mxu0 0
    %1582 = vmatpush1.bf16.msra.mxu0 %v1390
    %1583 = vmatprep.subr.bf16.mxu0 0
    %1584 = vmatpush2.bf16.msra.mxu0 0
    %1585 = vmatprep.subr.bf16.mxu0 0
    %1586 = vmatpush2.bf16.msra.mxu0 0
    %1587 = vmatprep.subr.bf16.mxu0 0
    %1588 = vmatpush2.bf16.msra.mxu0 0
    %1589 = vmatprep.subr.bf16.mxu0 0
    %1590 = vmatpush2.bf16.msra.mxu0 0
    %1591 = vmatprep.subr.bf16.mxu0 0
    %1592 = vmatpush2.bf16.msra.mxu0 0
    %1593 = vmatprep.subr.bf16.mxu0 0
    %1594 = vmatpush2.bf16.msra.mxu0 0
    %1595 = vmatprep.subr.bf16.mxu0 0
    %1596 = vmatpush2.bf16.msra.mxu0 0
    %1597 = vmatprep.subr.bf16.mxu0 0
    %1598 = vmatpush2.bf16.msra.mxu0 0
    %1599 = vmatprep.mubr.bf16.mxu0 0
    %1600 = vmatmul.mubr.bf16.gmra.mxu0 %v762
    %v1601 = vpop.f32.mrf.mxu0
    %v1602 = vadd.f32 %v1457, %v1601
    %v1603 = vpop.f32.mrf.mxu0
    %v1604 = vpop.f32.mrf.mxu0
    %v1605 = vadd.f32 %v1460, %v1604
    %v1606 = vpop.f32.mrf.mxu0
    %1607 = vmatprep.mubr.bf16.mxu0 0
    %1608 = vmatmul.mubr.bf16.gmra.mxu0 %v765
    %v1609 = vpop.f32.mrf.mxu0
    %v1610 = vadd.f32 %v1465, %v1609
    %v1611 = vpop.f32.mrf.mxu0
    %v1612 = vpop.f32.mrf.mxu0
    %v1613 = vadd.f32 %v1468, %v1612
    %v1614 = vpop.f32.mrf.mxu0
    %1615 = vmatprep.mubr.bf16.mxu0 0
    %1616 = vmatmul.mubr.bf16.gmra.mxu0 %v768
    %v1617 = vpop.f32.mrf.mxu0
    %v1618 = vadd.f32 %v1473, %v1617
    %v1619 = vpop.f32.mrf.mxu0
    %v1620 = vpop.f32.mrf.mxu0
    %v1621 = vadd.f32 %v1476, %v1620
    %v1622 = vpop.f32.mrf.mxu0
    %1623 = vmatprep.mubr.bf16.mxu0 0
    %1624 = vmatmul.mubr.bf16.gmra.mxu0 %v771
    %v1625 = vpop.f32.mrf.mxu0
    %v1626 = vadd.f32 %v1481, %v1625
    %v1627 = vpop.f32.mrf.mxu0
    %v1628 = vpop.f32.mrf.mxu0
    %v1629 = vadd.f32 %v1484, %v1628
    %v1630 = vpop.f32.mrf.mxu0
    %1631 = vmatprep.mubr.bf16.mxu0 0
    %1632 = vmatmul.mubr.bf16.gmra.mxu0 %v774
    %v1633 = vpop.f32.mrf.mxu0
    %v1634 = vadd.f32 %v1489, %v1633
    %v1635 = vpop.f32.mrf.mxu0
    %v1636 = vpop.f32.mrf.mxu0
    %v1637 = vadd.f32 %v1492, %v1636
    %v1638 = vpop.f32.mrf.mxu0
    %1639 = vmatprep.mubr.bf16.mxu0 0
    %1640 = vmatmul.mubr.bf16.gmra.mxu0 %v777
    %v1641 = vpop.f32.mrf.mxu0
    %v1642 = vadd.f32 %v1497, %v1641
    %v1643 = vpop.f32.mrf.mxu0
    %v1644 = vpop.f32.mrf.mxu0
    %v1645 = vadd.f32 %v1500, %v1644
    %v1646 = vpop.f32.mrf.mxu0
    %1647 = vmatprep.mubr.bf16.mxu0 0
    %1648 = vmatmul.mubr.bf16.gmra.mxu0 %v780
    %v1649 = vpop.f32.mrf.mxu0
    %v1650 = vadd.f32 %v1505, %v1649
    %v1651 = vpop.f32.mrf.mxu0
    %v1652 = vpop.f32.mrf.mxu0
    %v1653 = vadd.f32 %v1508, %v1652
    %v1654 = vpop.f32.mrf.mxu0
    %1655 = vmatprep.mubr.bf16.mxu0 0
    %1656 = vmatmul.mubr.bf16.gmra.mxu0 %v783
    %v1657 = vpop.f32.mrf.mxu0
    %v1658 = vadd.f32 %v1513, %v1657
    %v1659 = vpop.f32.mrf.mxu0
    %v1660 = vpop.f32.mrf.mxu0
    %v1661 = vadd.f32 %v1516, %v1660
    %v1662 = vpop.f32.mrf.mxu0
    %1663 = vmatprep.mubr.bf16.mxu0 0
    %1664 = vmatmul.mubr.bf16.gmra.mxu0 %v786
    %v1665 = vpop.f32.mrf.mxu0
    %v1666 = vadd.f32 %v1521, %v1665
    %v1667 = vpop.f32.mrf.mxu0
    %v1668 = vpop.f32.mrf.mxu0
    %v1669 = vadd.f32 %v1524, %v1668
    %v1670 = vpop.f32.mrf.mxu0
    %1671 = vmatprep.mubr.bf16.mxu0 0
    %1672 = vmatmul.mubr.bf16.gmra.mxu0 %v789
    %v1673 = vpop.f32.mrf.mxu0
    %v1674 = vadd.f32 %v1529, %v1673
    %v1675 = vpop.f32.mrf.mxu0
    %v1676 = vpop.f32.mrf.mxu0
    %v1677 = vadd.f32 %v1532, %v1676
    %v1678 = vpop.f32.mrf.mxu0
    %1679 = vmatprep.mubr.bf16.mxu0 0
    %1680 = vmatmul.mubr.bf16.gmra.mxu0 %v792
    %v1681 = vpop.f32.mrf.mxu0
    %v1682 = vadd.f32 %v1537, %v1681
    %v1683 = vpop.f32.mrf.mxu0
    %v1684 = vpop.f32.mrf.mxu0
    %v1685 = vadd.f32 %v1540, %v1684
    %v1686 = vpop.f32.mrf.mxu0
    %1687 = vmatprep.mubr.bf16.mxu0 0
    %1688 = vmatmul.mubr.bf16.gmra.mxu0 %v795
    %v1689 = vpop.f32.mrf.mxu0
    %v1690 = vadd.f32 %v1545, %v1689
    %v1691 = vpop.f32.mrf.mxu0
    %v1692 = vpop.f32.mrf.mxu0
    %v1693 = vadd.f32 %v1548, %v1692
    %v1694 = vpop.f32.mrf.mxu0
    %1695 = vmatprep.mubr.bf16.mxu0 0
    %1696 = vmatmul.mubr.bf16.gmra.mxu0 %v798
    %v1697 = vpop.f32.mrf.mxu0
    %v1698 = vadd.f32 %v1553, %v1697
    %v1699 = vpop.f32.mrf.mxu0
    %v1700 = vpop.f32.mrf.mxu0
    %v1701 = vadd.f32 %v1556, %v1700
    %v1702 = vpop.f32.mrf.mxu0
    %1703 = vmatprep.mubr.bf16.mxu0 0
    %1704 = vmatmul.mubr.bf16.gmra.mxu0 %v801
    %v1705 = vpop.f32.mrf.mxu0
    %v1706 = vadd.f32 %v1561, %v1705
    %v1707 = vpop.f32.mrf.mxu0
    %v1708 = vpop.f32.mrf.mxu0
    %v1709 = vadd.f32 %v1564, %v1708
    %v1710 = vpop.f32.mrf.mxu0
    %1711 = vdwg.mxu0
    %v1712 = vmax.f32 %v1602, %v1610
    %v1713 = vmax.f32 %v1605, %v1613
    %v1714 = vmax.f32 %v1712, %v1618
    %v1715 = vmax.f32 %v1713, %v1621
    %v1716 = vmax.f32 %v1714, %v1626
    %v1717 = vmax.f32 %v1715, %v1629
    %v1718 = vmax.f32 %v1716, %v1634
    %v1719 = vmax.f32 %v1717, %v1637
    %v1720 = vmax.f32 %v1718, %v1642
    %v1721 = vmax.f32 %v1719, %v1645
    %v1722 = vmax.f32 %v1720, %v1650
    %v1723 = vmax.f32 %v1721, %v1653
    %v1724 = vmax.f32 %v1722, %v1658
    %v1725 = vmax.f32 %v1723, %v1661
    %v1726 = vmax.f32 %v1724, %v1666
    %v1727 = vmax.f32 %v1725, %v1669
    %v1728 = vmax.f32 %v1726, %v1674
    %v1729 = vmax.f32 %v1727, %v1677
    %v1730 = vmax.f32 %v1728, %v1682
    %v1731 = vmax.f32 %v1729, %v1685
    %v1732 = vmax.f32 %v1730, %v1690
    %v1733 = vmax.f32 %v1731, %v1693
    %v1734 = vmax.f32 %v1732, %v1698
    %v1735 = vmax.f32 %v1733, %v1701
    %v1736 = vmax.f32 %v1734, %v1706
    %v1737 = vmax.f32 %v1735, %v1709
    %v1738 = vld [vmem:[%s3] sm:$0x1]
    %v1740 = vlaneseq
    %v1741 = vshrl.u32 %v1740, 7
    %v1742 = vsub.s32 0, %v1741
    %v1743 = vrot.slane %v1738, %v1742
    %v1745 = vadd.f32 %v1736, %v1743
    %v1746 = vadd.f32 %v1737, %v1743
    %v1747 = vmax.f32 %v1745, 0.0
    %v1748 = vmax.f32 %v1746, 0.0
    %1749 = vst [vmem:[#allocation9] sm:$0xff] %v1747
    %1750 = vst [vmem:[#allocation9 + $0x8] sm:$0xff] %v1748
    // Predicated region
    $region30: #{tpu_custom_call.1} parent=1 // pred_check
      _
    $region31: #{tpu_custom_call.1} parent=1 // pred_check_branch
      %1752 = sbr.rel (0) target = $region33
    $region32: #{tpu_custom_call.1} parent=1 // pred_region
      %s1754 = ssub.s32 256, 256
      %1755 = vsyncadd [#allocation5], %s1754
      %s1756 = sshll.u32 [#allocation9], 4
      %s1757 = int_to_ptr.vmem [resolvable:$true] %s1756
      %1762 = dma.vmem_to_hbm [thread:$0]  %s1757, 256, %s4, [#allocation5], 128, 128, 8
    $region33: #{tpu_custom_call.1} parent=1 // pred_fallthru
      _
    // Predicated region
    $region34: #{tpu_custom_call.1} parent=1 // pred_check
      _
    $region35: #{tpu_custom_call.1} parent=1 // pred_check_branch
      %1764 = sbr.rel (0) target = $region37
    $region36: #{tpu_custom_call.1} parent=1 // pred_region
      %1765 = dma.done [#allocation5], 256
    $region37: #{tpu_custom_call.1} parent=1 // pred_fallthru
      _
    %1766 = vsyncpa [#allocation4], 1
    %1767 = vsyncpa [#allocation7], 1
    %1768 = vsyncpa [#allocation5], 1

</llo_original>
